<compile_context>
chip_gen: v7x
topology: tpu7x:2x2x1
jax: 0.10.0
libtpu: 0.0.40
codegen_flags: <defaults>
</compile_context>

<pallas_src>
from functools import partial

import jax
import jax.numpy as jnp
from jax.experimental import pallas as pl
from jax.experimental.pallas import tpu as pltpu


# ----------------------------------------------------------------------------
# Fused Pallas kernel: full GCN stack + L2 normalization for a batch of graphs.
# Grid = (graph, layer, row_block); layer/row axes are sequential ("arbitrary"),
# the graph axis is "parallel" (independent graphs -> megacore sharding).
# ----------------------------------------------------------------------------
def _fused_gcn_kernel(n_valid_ref, adj_ref, feats_ref, dinv_ref, w_ref,
                      out_ref, hw_scratch, h_scratch, *,
                      num_layers, block_m, adj_resident):
    """One grid step = (graph g, layer l, row-block i).

    n_valid_ref : (G,)      i32  SMEM  valid (unpadded) row count per graph
    adj_ref     : resident (1, N, N) or streamed (1, block_m, N)  bf16 raw A+I
    feats_ref   : (1, N, D) bf16  input features of graph g (VMEM resident)
    dinv_ref    : (1, N, 1) f32   d^{-1/2} of graph g (VMEM resident)
    w_ref       : (1, D, D) bf16  weight slab of layer l
    out_ref     : (1, block_m, D) f32  final L2-normalized embeddings
    hw_scratch  : (N, D)   bf16  (D^{-1/2} H_l) @ W_l for the current layer
    h_scratch   : (N, D)   bf16  hidden state H_{l+1} written during layer l
    """
    g = pl.program_id(0)
    l = pl.program_id(1)
    i = pl.program_id(2)
    row0 = pl.multiple_of(i * block_m, block_m)
    n_valid = n_valid_ref[g]

    if num_layers > 1:
        @pl.when((l == 0) & (i == 0))
        def _init_hidden():
            # Zero once per graph so fully-padded (skipped) row blocks never
            # feed garbage into the next layer's H @ W.
            h_scratch[...] = jnp.zeros_like(h_scratch)

    # Once per (graph, layer): HW = (D^{-1/2} H_l) @ W_l  -> every row block
    # below needs only ONE MXU matmul (A_block @ HW).
    @pl.when(i == 0)
    def _compute_hw():
        w = w_ref[0]            # (D, D) bf16
        dinv = dinv_ref[0]      # (N, 1) f32

        def hw_from(h_prev):    # h_prev: (N, D) bf16
            hs = (h_prev.astype(jnp.float32) * dinv).astype(jnp.bfloat16)
            hw_scratch[...] = jnp.dot(
                hs, w, preferred_element_type=jnp.float32).astype(jnp.bfloat16)

        @pl.when(l == 0)
        def _():
            hw_from(feats_ref[0])

        if num_layers > 1:
            @pl.when(l > 0)
            def _():
                hw_from(h_scratch[...])

    # Skip row blocks that are entirely padding (the smaller graph).
    @pl.when(row0 < n_valid)
    def _compute_block():
        if adj_resident:
            a_blk = adj_ref[0, pl.ds(row0, block_m), :]   # (bm, N) bf16
        else:
            a_blk = adj_ref[0]                            # (bm, N) bf16

        # Single MXU op per block, f32 accumulation, then D^{-1/2} row scaling.
        y = jnp.dot(a_blk, hw_scratch[...],
                    preferred_element_type=jnp.float32)    # (bm, D) f32
        y = y * dinv_ref[0, pl.ds(row0, block_m), :]        # (bm, 1) f32

        if num_layers > 1:
            @pl.when(l < num_layers - 1)
            def _store_hidden():                            # relu only on hidden layers
                h_scratch[pl.ds(row0, block_m), :] = jnp.maximum(
                    y, 0.0).astype(jnp.bfloat16)

        @pl.when(l == num_layers - 1)
        def _epilogue():
            # F.normalize(y, p=2, dim=-1) = y * rsqrt(max(||y||^2, 1e-24))
            ssq = jnp.sum(y * y, axis=-1, keepdims=True)
            out_ref[0] = (y * jax.lax.rsqrt(jnp.maximum(ssq, 1e-24))
                          ).astype(out_ref.dtype)


def _vmem_capacity_bytes():
    """Per-TensorCore VMEM (v5e/v6e: 128 MiB, v7x: 64 MiB); conservative fallback."""
    try:
        cap = getattr(pltpu.get_tpu_info(), "vmem_capacity_bytes", None)
        if cap:
            return int(cap)
    except Exception:
        pass
    return 64 << 20


def _plan_schedule(n, d, vmem_budget):
    """Pick (adj_resident, block_m).  Prefer adjacency residency (kills the
    per-layer re-stream of the dominant tensor), then the largest row block."""
    def need(adj_res, bm):
        adj_blk = n * n * 2 if adj_res else bm * n * 2
        return (2 * adj_blk          # adjacency (pipeline double-buffered)
                + 2 * n * d * 2      # features (resident per graph)
                + 2 * n * 4          # d^{-1/2} vector
                + 2 * d * d * 2      # per-layer weight slab
                + 2 * bm * d * 4     # output block
                + 2 * (n * d * 2))   # hw_scratch + h_scratch (bf16)

    for adj_res in (True, False):
        for bm in (512, 256, 128):
            if n % bm:
                continue
            if need(adj_res, bm) <= vmem_budget:
                return adj_res, bm, need(adj_res, bm)
    bm = 128 if n % 128 == 0 else n
    return False, bm, need(False, bm)


def fused_gcn_embed(adj, feats, dinv, weights, n_valid):
    """adj: (G, N, N) bf16 raw (A_sym + I), feats: (G, N, D) bf16,
    dinv: (G, N, 1) f32 d^{-1/2}, weights: (L, D, D) bf16, n_valid: (G,) i32
    -> (G, N, D) f32 L2-normalized node embeddings."""
    g, n, _ = adj.shape
    d = feats.shape[-1]
    num_layers = int(weights.shape[0])

    vmem_cap = _vmem_capacity_bytes()
    adj_resident, block_m, need = _plan_schedule(n, d, int(0.75 * vmem_cap))
    vmem_limit = int(min(max(need + (4 << 20), 16 << 20), 0.9 * vmem_cap))

    if adj_resident:
        adj_spec = pl.BlockSpec((1, n, n), lambda gi, li, ri, nv: (gi, 0, 0))
    else:
        adj_spec = pl.BlockSpec((1, block_m, n), lambda gi, li, ri, nv: (gi, ri, 0))

    cost = pl.CostEstimate(
        flops=2 * g * num_layers * (n * n * d + n * d * d),
        transcendentals=g * n,
        bytes_accessed=(adj.size * 2 + feats.size * 2 + dinv.size * 4
                        + weights.size * 2 + g * n * d * 4),
    )

    return pl.pallas_call(
        partial(_fused_gcn_kernel, num_layers=num_layers, block_m=block_m,
                adj_resident=adj_resident),
        out_shape=jax.ShapeDtypeStruct((g, n, d), jnp.float32),
        grid_spec=pltpu.PrefetchScalarGridSpec(
            num_scalar_prefetch=1,
            grid=(g, num_layers, n // block_m),
            in_specs=[
                adj_spec,
                pl.BlockSpec((1, n, d), lambda gi, li, ri, nv: (gi, 0, 0)),
                pl.BlockSpec((1, n, 1), lambda gi, li, ri, nv: (gi, 0, 0)),
                pl.BlockSpec((1, d, d), lambda gi, li, ri, nv: (li, 0, 0)),
            ],
            out_specs=pl.BlockSpec((1, block_m, d),
                                   lambda gi, li, ri, nv: (gi, ri, 0)),
            scratch_shapes=[pltpu.VMEM((n, d), jnp.bfloat16),   # hw_scratch
                            pltpu.VMEM((n, d), jnp.bfloat16)],  # h_scratch
        ),
        compiler_params=pltpu.CompilerParams(
            dimension_semantics=("parallel", "arbitrary", "arbitrary"),
            vmem_limit_bytes=vmem_limit,
        ),
        cost_estimate=cost,
    )(n_valid, adj, feats, dinv, weights)


# ----------------------------------------------------------------------------
# Glue (plain JAX): raw adjacency + d^{-1/2} construction, init, seed gather.
# ----------------------------------------------------------------------------
def build_raw_adj(edges, n):
    """Binary symmetrization + self loops, kept EXACT in bf16 (values 0/1/2);
    returns (A_raw bf16, d^{-1/2} f32).  Normalization is applied in-kernel.
    TODO(synk): a self-loop edge in the edge list yields diag=2 pre-norm;
                original MultiLayerGCN preprocessing not provided."""
    a = jnp.zeros((n, n), jnp.bfloat16)
    a = a.at[edges[:, 0], edges[:, 1]].set(1.0)
    a = a.at[edges[:, 1], edges[:, 0]].set(1.0)
    a = a + jnp.eye(n, dtype=jnp.bfloat16)
    deg = jnp.sum(a.astype(jnp.float32), axis=-1)
    return a, jax.lax.rsqrt(deg)


def build_norm_adj_f32(edges, n):
    """f32 normalized adjacency — reference path only."""
    a = jnp.zeros((n, n), jnp.float32)
    a = a.at[edges[:, 0], edges[:, 1]].set(1.0)
    a = a.at[edges[:, 1], edges[:, 0]].set(1.0)
    a = a + jnp.eye(n, dtype=jnp.float32)
    d = jax.lax.rsqrt(jnp.sum(a, axis=-1))
    return a * d[:, None] * d[None, :]


def xavier_uniform(key, shape):
    fan_in, fan_out = shape[-2], shape[-1]
    limit = jnp.sqrt(6.0 / (fan_in + fan_out))
    return jax.random.uniform(key, shape, jnp.float32, -limit, limit)


def stru_gnn_forward(params, sr_ent_seeds, tg_ent_seeds):
    feats_sr = params["feats_sr"]
    feats_tg = params["feats_tg"]
    n_sr, _ = feats_sr.shape
    n_tg = feats_tg.shape[0]
    weights = jnp.stack(params["gcn_weights"]).astype(jnp.bfloat16)  # (L, D, D)

    # Pad both graphs to a common, MXU-friendly row count and batch them into
    # a single fused pallas_call (graph axis = megacore-parallel grid axis).
    n_pad = -(-max(n_sr, n_tg) // 128) * 128

    adj_sr, dinv_sr = build_raw_adj(params["edges_sr"], n_pad)
    adj_tg, dinv_tg = build_raw_adj(params["edges_tg"], n_pad)
    adj = jnp.stack([adj_sr, adj_tg])                          # (2, N, N) bf16
    dinv = jnp.stack([dinv_sr, dinv_tg])[..., None]            # (2, N, 1) f32
    feats = jnp.stack([
        jnp.pad(feats_sr, ((0, n_pad - n_sr), (0, 0))),
        jnp.pad(feats_tg, ((0, n_pad - n_tg), (0, 0))),
    ]).astype(jnp.bfloat16)                                    # (2, N, D) bf16
    n_valid = jnp.array([n_sr, n_tg], jnp.int32)

    ent_hid = fused_gcn_embed(adj, feats, dinv, weights, n_valid)  # (2, N, D) f32

    sr_ent_hid = ent_hid[0, :n_sr]
    tg_ent_hid = ent_hid[1, :n_tg]
    # Seed gather (sr_ent_hid[sr_ent_seeds]) kept as JAX glue.
    sr_seed_hid = jnp.take(sr_ent_hid, sr_ent_seeds, axis=0)
    tg_seed_hid = jnp.take(tg_ent_hid, tg_ent_seeds, axis=0)
    return sr_seed_hid, tg_seed_hid, sr_ent_hid, tg_ent_hid


def reference_forward(params, sr_ent_seeds, tg_ent_seeds):
    """Pure-JAX float32 reference of the same forward pass (for validation)."""
    def gcn(adj, feats):
        h = feats
        ws = params["gcn_weights"]
        for l, w in enumerate(ws):
            h = adj @ h @ w
            if l < len(ws) - 1:
                h = jnp.maximum(h, 0.0)
        nrm = jnp.sqrt(jnp.sum(h * h, axis=-1, keepdims=True))
        return h / jnp.maximum(nrm, 1e-12)

    sr_hid = gcn(build_norm_adj_f32(params["edges_sr"], params["feats_sr"].shape[0]),
                 params["feats_sr"])
    tg_hid = gcn(build_norm_adj_f32(params["edges_tg"], params["feats_tg"].shape[0]),
                 params["feats_tg"])
    return (jnp.take(sr_hid, sr_ent_seeds, axis=0),
            jnp.take(tg_hid, tg_ent_seeds, axis=0), sr_hid, tg_hid)


# ----------------------------------------------------------------------------
if __name__ == "__main__":
    ENT_NUM_SR = 128
    ENT_NUM_TG = 128
    DIM = 128
    LAYER_NUM = 2
    NUM_EDGES = 256
    NUM_SEEDS = 16

    root = jax.random.PRNGKey(0)
    k_emb, k_esr, k_etg, k_w, k_seed = jax.random.split(root, 5)

    # nn.init.xavier_uniform_ over the stacked (sr+tg, dim) table, then split.
    emb = xavier_uniform(k_emb, (ENT_NUM_SR + ENT_NUM_TG, DIM))
    feats_sr = emb[:ENT_NUM_SR]
    feats_tg = emb[ENT_NUM_SR:]

    edges_sr = jax.random.randint(k_esr, (NUM_EDGES, 2), 0, ENT_NUM_SR, jnp.int32)
    edges_tg = jax.random.randint(k_etg, (NUM_EDGES, 2), 0, ENT_NUM_TG, jnp.int32)

    w_keys = jax.random.split(k_w, LAYER_NUM)
    gcn_weights = [xavier_uniform(k, (DIM, DIM)) for k in w_keys]

    sr_ent_seeds = jax.random.randint(
        jax.random.fold_in(k_seed, 0), (NUM_SEEDS,), 0, ENT_NUM_SR, jnp.int32)
    tg_ent_seeds = jax.random.randint(
        jax.random.fold_in(k_seed, 1), (NUM_SEEDS,), 0, ENT_NUM_TG, jnp.int32)

    params = {
        "feats_sr": feats_sr,
        "feats_tg": feats_tg,
        "edges_sr": edges_sr,
        "edges_tg": edges_tg,
        "gcn_weights": gcn_weights,
    }

    fwd = jax.jit(stru_gnn_forward)
    outs = fwd(params, sr_ent_seeds, tg_ent_seeds)
    jax.block_until_ready(outs)
    sr_seed_hid, tg_seed_hid, sr_ent_hid, tg_ent_hid = outs

    assert sr_seed_hid.shape == (NUM_SEEDS, DIM)
    assert tg_seed_hid.shape == (NUM_SEEDS, DIM)
    assert sr_ent_hid.shape == (ENT_NUM_SR, DIM)
    assert tg_ent_hid.shape == (ENT_NUM_TG, DIM)

    # Loose check against the float32 reference (kernel matmuls run in bf16
    # with f32 accumulation, so allow a generous tolerance).
    refs = reference_forward(params, sr_ent_seeds, tg_ent_seeds)
    max_err = max(float(jnp.max(jnp.abs(a - b))) for a, b in zip(outs, refs))
    assert max_err < 0.2, f"max abs error vs f32 reference too large: {max_err}"

    print("KERNEL_OK")
</pallas_src>

<mosaic_0001>
module attributes {stable_mosaic.version = 11 : i64} {
  func.func @_fused_gcn_kernel(%arg0: i32, %arg1: i32, %arg2: i32, %arg3: memref<2xi32, #tpu.memory_space<smem>>, %arg4: memref<1x128x128xbf16, #tpu.memory_space<vmem>>, %arg5: memref<1x128x128xbf16, #tpu.memory_space<vmem>>, %arg6: memref<1x128x1xf32, #tpu.memory_space<vmem>>, %arg7: memref<1x128x128xbf16, #tpu.memory_space<vmem>>, %arg8: memref<1x128x128xf32, #tpu.memory_space<vmem>>, %arg9: memref<128x128xbf16, #tpu.memory_space<vmem>>, %arg10: memref<128x128xbf16, #tpu.memory_space<vmem>>) attributes {dimension_semantics = [#tpu.dimension_semantics<parallel>, #tpu.dimension_semantics<arbitrary>, #tpu.dimension_semantics<arbitrary>], iteration_bounds = array<i64: 2, 2, 1>, scalar_prefetch = 1 : i64, scratch_operands = 2 : i64, tpu.core_type = #tpu.core_type<tc>, window_params = [{transform_indices = @transform_0, window_bounds = array<i64: 1, 128, 128>}, {transform_indices = @transform_1, window_bounds = array<i64: 1, 128, 128>}, {transform_indices = @transform_2, window_bounds = array<i64: 1, 128, 1>}, {transform_indices = @transform_3, window_bounds = array<i64: 1, 128, 128>}, {transform_indices = @transform_4, window_bounds = array<i64: 1, 128, 128>}]} {
    %c128_i32 = arith.constant 128 : i32
    %0 = arith.muli %arg2, %c128_i32 : i32
    %1 = tpu.assume_multiple %0, 128 : i32
    %2 = arith.index_cast %arg0 : i32 to index
    %3 = memref.load %arg3[%2] : memref<2xi32, #tpu.memory_space<smem>>
    %c0_i32 = arith.constant 0 : i32
    %4 = arith.cmpi eq, %arg1, %c0_i32 : i32
    %c0_i32_0 = arith.constant 0 : i32
    %5 = arith.cmpi eq, %arg2, %c0_i32_0 : i32
    %6 = arith.andi %4, %5 : i1
    %7 = arith.extui %6 : i1 to i32
    %c0_i32_1 = arith.constant 0 : i32
    %8 = arith.cmpi ne, %7, %c0_i32_1 : i32
    scf.if %8 {
      %cst = arith.constant 0.000000e+00 : bf16
      %15 = vector.broadcast %cst : bf16 to vector<128x128xbf16>
      %c0 = arith.constant 0 : index
      %c0_5 = arith.constant 0 : index
      %16 = vector.load %arg10[%c0, %c0_5] : memref<128x128xbf16, #tpu.memory_space<vmem>>, vector<128x128xbf16>
      tpu.vector_store %arg10[%c0, %c0_5], %15 {strides = array<i32>} : memref<128x128xbf16, #tpu.memory_space<vmem>>, vector<128x128xbf16>,
    } else {
    }
    %c0_i32_2 = arith.constant 0 : i32
    %9 = arith.cmpi eq, %arg2, %c0_i32_2 : i32
    %10 = arith.extui %9 : i1 to i32
    %c0_i32_3 = arith.constant 0 : i32
    %11 = arith.cmpi ne, %10, %c0_i32_3 : i32
    scf.if %11 {
      %c0 = arith.constant 0 : index
      %c0_5 = arith.constant 0 : index
      %c0_6 = arith.constant 0 : index
      %15 = vector.load %arg7[%c0, %c0_5, %c0_6] : memref<1x128x128xbf16, #tpu.memory_space<vmem>>, vector<1x128x128xbf16>
      %16 = vector.shape_cast %15 : vector<1x128x128xbf16> to vector<128x128xbf16>
      %c0_7 = arith.constant 0 : index
      %c0_8 = arith.constant 0 : index
      %c0_9 = arith.constant 0 : index
      %17 = vector.load %arg6[%c0_7, %c0_8, %c0_9] : memref<1x128x1xf32, #tpu.memory_space<vmem>>, vector<1x128x1xf32>
      %18 = vector.shape_cast %17 : vector<1x128x1xf32> to vector<128x1xf32>
      %c0_i32_10 = arith.constant 0 : i32
      %19 = arith.cmpi eq, %arg1, %c0_i32_10 : i32
      %20 = arith.extui %19 : i1 to i32
      %c0_i32_11 = arith.constant 0 : i32
      %21 = arith.cmpi ne, %20, %c0_i32_11 : i32
      scf.if %21 {
        %c0_14 = arith.constant 0 : index
        %c0_15 = arith.constant 0 : index
        %c0_16 = arith.constant 0 : index
        %25 = vector.load %arg5[%c0_14, %c0_15, %c0_16] : memref<1x128x128xbf16, #tpu.memory_space<vmem>>, vector<1x128x128xbf16>
        %26 = vector.shape_cast %25 : vector<1x128x128xbf16> to vector<128x128xbf16>
        %27 = arith.extf %26 : vector<128x128xbf16> to vector<128x128xf32>
        %28 = vector.broadcast %18 : vector<128x1xf32> to vector<128x128xf32>
        %29 = arith.mulf %27, %28 : vector<128x128xf32>
        %30 = arith.truncf %29 : vector<128x128xf32> to vector<128x128xbf16>
        %cst = arith.constant dense<0.000000e+00> : vector<128x128xf32>
        %31 = tpu.matmul %30, %16, %cst {dimension_numbers = #tpu.dot_dimension_numbers<[1], [0], [0], [1], [0, 0, 1, 1], [], []>} : vector<128x128xbf16>, vector<128x128xbf16>, vector<128x128xf32> -> vector<128x128xf32>
        %32 = arith.truncf %31 : vector<128x128xf32> to vector<128x128xbf16>
        %c0_17 = arith.constant 0 : index
        %c0_18 = arith.constant 0 : index
        %33 = vector.load %arg9[%c0_17, %c0_18] : memref<128x128xbf16, #tpu.memory_space<vmem>>, vector<128x128xbf16>
        tpu.vector_store %arg9[%c0_17, %c0_18], %32 {strides = array<i32>} : memref<128x128xbf16, #tpu.memory_space<vmem>>, vector<128x128xbf16>,
      } else {
      }
      %c0_i32_12 = arith.constant 0 : i32
      %22 = arith.cmpi sgt, %arg1, %c0_i32_12 : i32
      %23 = arith.extui %22 : i1 to i32
      %c0_i32_13 = arith.constant 0 : i32
      %24 = arith.cmpi ne, %23, %c0_i32_13 : i32
      scf.if %24 {
        %c0_14 = arith.constant 0 : index
        %c0_15 = arith.constant 0 : index
        %25 = vector.load %arg10[%c0_14, %c0_15] : memref<128x128xbf16, #tpu.memory_space<vmem>>, vector<128x128xbf16>
        %26 = arith.extf %25 : vector<128x128xbf16> to vector<128x128xf32>
        %27 = vector.broadcast %18 : vector<128x1xf32> to vector<128x128xf32>
        %28 = arith.mulf %26, %27 : vector<128x128xf32>
        %29 = arith.truncf %28 : vector<128x128xf32> to vector<128x128xbf16>
        %cst = arith.constant dense<0.000000e+00> : vector<128x128xf32>
        %30 = tpu.matmul %29, %16, %cst {dimension_numbers = #tpu.dot_dimension_numbers<[1], [0], [0], [1], [0, 0, 1, 1], [], []>} : vector<128x128xbf16>, vector<128x128xbf16>, vector<128x128xf32> -> vector<128x128xf32>
        %31 = arith.truncf %30 : vector<128x128xf32> to vector<128x128xbf16>
        %c0_16 = arith.constant 0 : index
        %c0_17 = arith.constant 0 : index
        %32 = vector.load %arg9[%c0_16, %c0_17] : memref<128x128xbf16, #tpu.memory_space<vmem>>, vector<128x128xbf16>
        tpu.vector_store %arg9[%c0_16, %c0_17], %31 {strides = array<i32>} : memref<128x128xbf16, #tpu.memory_space<vmem>>, vector<128x128xbf16>,
      } else {
      }
    } else {
    }
    %12 = arith.cmpi slt, %1, %3 : i32
    %13 = arith.extui %12 : i1 to i32
    %c0_i32_4 = arith.constant 0 : i32
    %14 = arith.cmpi ne, %13, %c0_i32_4 : i32
    scf.if %14 {
      %c0 = arith.constant 0 : index
      %15 = arith.index_cast %1 : i32 to index
      %c0_5 = arith.constant 0 : index
      %16 = vector.load %arg4[%c0, %15, %c0_5] : memref<1x128x128xbf16, #tpu.memory_space<vmem>>, vector<1x128x128xbf16>
      %17 = vector.shape_cast %16 : vector<1x128x128xbf16> to vector<128x128xbf16>
      %c0_6 = arith.constant 0 : index
      %c0_7 = arith.constant 0 : index
      %18 = vector.load %arg9[%c0_6, %c0_7] : memref<128x128xbf16, #tpu.memory_space<vmem>>, vector<128x128xbf16>
      %cst = arith.constant dense<0.000000e+00> : vector<128x128xf32>
      %19 = tpu.matmul %17, %18, %cst {dimension_numbers = #tpu.dot_dimension_numbers<[1], [0], [0], [1], [0, 0, 1, 1], [], []>} : vector<128x128xbf16>, vector<128x128xbf16>, vector<128x128xf32> -> vector<128x128xf32>
      %c0_8 = arith.constant 0 : index
      %20 = arith.index_cast %1 : i32 to index
      %c0_9 = arith.constant 0 : index
      %21 = vector.load %arg6[%c0_8, %20, %c0_9] : memref<1x128x1xf32, #tpu.memory_space<vmem>>, vector<1x128x1xf32>
      %22 = vector.shape_cast %21 : vector<1x128x1xf32> to vector<128x1xf32>
      %23 = vector.broadcast %22 : vector<128x1xf32> to vector<128x128xf32>
      %24 = arith.mulf %19, %23 : vector<128x128xf32>
      %c1_i32 = arith.constant 1 : i32
      %25 = arith.cmpi slt, %arg1, %c1_i32 : i32
      %26 = arith.extui %25 : i1 to i32
      %c0_i32_10 = arith.constant 0 : i32
      %27 = arith.cmpi ne, %26, %c0_i32_10 : i32
      scf.if %27 {
        %cst_13 = arith.constant 0.000000e+00 : f32
        %31 = vector.broadcast %cst_13 : f32 to vector<128x128xf32>
        %32 = arith.maximumf %24, %31 : vector<128x128xf32>
        %33 = arith.truncf %32 : vector<128x128xf32> to vector<128x128xbf16>
        %34 = arith.index_cast %1 : i32 to index
        %c0_14 = arith.constant 0 : index
        %35 = vector.load %arg10[%34, %c0_14] : memref<128x128xbf16, #tpu.memory_space<vmem>>, vector<128x128xbf16>
        tpu.vector_store %arg10[%34, %c0_14], %33 {strides = array<i32>} : memref<128x128xbf16, #tpu.memory_space<vmem>>, vector<128x128xbf16>,
      } else {
      }
      %c1_i32_11 = arith.constant 1 : i32
      %28 = arith.cmpi eq, %arg1, %c1_i32_11 : i32
      %29 = arith.extui %28 : i1 to i32
      %c0_i32_12 = arith.constant 0 : i32
      %30 = arith.cmpi ne, %29, %c0_i32_12 : i32
      scf.if %30 {
        %31 = arith.mulf %24, %24 : vector<128x128xf32>
        %cst_13 = arith.constant dense<0.000000e+00> : vector<128xf32>
        %32 = vector.multi_reduction <add>, %31, %cst_13 [1] : vector<128x128xf32> to vector<128xf32>
        %33 = vector.shape_cast %32 : vector<128xf32> to vector<128x1xf32>
        %cst_14 = arith.constant 1.000000e-24 : f32
        %34 = vector.broadcast %cst_14 : f32 to vector<128x1xf32>
        %35 = arith.maximumf %33, %34 : vector<128x1xf32>
        %36 = math.rsqrt %35 : vector<128x1xf32>
        %37 = vector.broadcast %36 : vector<128x1xf32> to vector<128x128xf32>
        %38 = arith.mulf %24, %37 : vector<128x128xf32>
        %c0_15 = arith.constant 0 : index
        %c0_16 = arith.constant 0 : index
        %c0_17 = arith.constant 0 : index
        %39 = vector.load %arg8[%c0_15, %c0_16, %c0_17] : memref<1x128x128xf32, #tpu.memory_space<vmem>>, vector<1x128x128xf32>
        %40 = vector.shape_cast %39 : vector<1x128x128xf32> to vector<128x128xf32>
        %41 = vector.shape_cast %38 : vector<128x128xf32> to vector<1x128x128xf32>
        tpu.vector_store %arg8[%c0_15, %c0_16, %c0_17], %41 {strides = array<i32>} : memref<1x128x128xf32, #tpu.memory_space<vmem>>, vector<1x128x128xf32>,
      } else {
      }
    } else {
    }
    return
  }
  func.func @transform_0(%arg0: i32, %arg1: i32, %arg2: i32, %arg3: memref<2xi32, #tpu.memory_space<smem>>) -> (i32, i32, i32) {
    %c0_i32 = arith.constant 0 : i32
    %c0_i32_0 = arith.constant 0 : i32
    %c0_i32_1 = arith.constant 0 : i32
    return %arg0, %c0_i32, %c0_i32_0 : i32, i32, i32
  }
  func.func @transform_1(%arg0: i32, %arg1: i32, %arg2: i32, %arg3: memref<2xi32, #tpu.memory_space<smem>>) -> (i32, i32, i32) {
    %c0_i32 = arith.constant 0 : i32
    %c0_i32_0 = arith.constant 0 : i32
    %c0_i32_1 = arith.constant 0 : i32
    return %arg0, %c0_i32, %c0_i32_0 : i32, i32, i32
  }
  func.func @transform_2(%arg0: i32, %arg1: i32, %arg2: i32, %arg3: memref<2xi32, #tpu.memory_space<smem>>) -> (i32, i32, i32) {
    %c0_i32 = arith.constant 0 : i32
    %c0_i32_0 = arith.constant 0 : i32
    %c0_i32_1 = arith.constant 0 : i32
    return %arg0, %c0_i32, %c0_i32_0 : i32, i32, i32
  }
  func.func @transform_3(%arg0: i32, %arg1: i32, %arg2: i32, %arg3: memref<2xi32, #tpu.memory_space<smem>>) -> (i32, i32, i32) {
    %c0_i32 = arith.constant 0 : i32
    %c0_i32_0 = arith.constant 0 : i32
    %c0_i32_1 = arith.constant 0 : i32
    return %arg1, %c0_i32, %c0_i32_0 : i32, i32, i32
  }
  func.func @transform_4(%arg0: i32, %arg1: i32, %arg2: i32, %arg3: memref<2xi32, #tpu.memory_space<smem>>) -> (i32, i32, i32) {
    %c0_i32 = arith.constant 0 : i32
    %c0_i32_0 = arith.constant 0 : i32
    return %arg0, %arg2, %c0_i32 : i32, i32, i32
  }
}

</mosaic_0001>

<llo_original>
// kernel: stru_gnn_forward.1
$region0: #{stru_gnn_forward.1}
  #allocation0 [shape = 'u32[]', space=smem, size = 0x4, offset = 0x4, fixed_abs, tag = 'smem constant byte address 0x4 - core index']
  #allocation1 [shape = 'u32[144,128]{1,0:T(1,128)}', space=vmem, size = 0x12000, scoped, tag = 'internal scratch']
  #allocation2 [shape = 'bf16[128,128]{1,0:T(16,128)(2,1)}', space=vmem, size = 0x8000, scoped, tag = 'scratch operand']
  #allocation3 [shape = 'bf16[128,128]{1,0:T(16,128)(2,1)}', space=vmem, size = 0x8000, scoped, tag = 'scratch operand']
  #allocation4 [shape = 's32[1]{0}', space=sflag, size = 0x4, scoped, tag = 'scoped memory for stru_gnn_forward.1']
  #allocation5 [shape = 'u8[512]{0}', space=smem, size = 0x200, scoped, tag = 'prefetched SMEM operand 0']
  %s0 = inlined_call_operand.vmem [shape: s32[2], index: 0, kind: input, shape index: {}]
  %s1 = inlined_call_operand.vmem [shape: bf16[2,128,128], index: 1, kind: input, shape index: {}]
  %s2 = inlined_call_operand.vmem [shape: bf16[2,128,128], index: 2, kind: input, shape index: {}]
  %s3 = inlined_call_operand.vmem [shape: f32[2,128,1], index: 3, kind: input, shape index: {}]
  %s4 = inlined_call_operand.vmem [shape: bf16[2,128,128], index: 4, kind: input, shape index: {}]
  %s5 = inlined_call_operand.vmem [shape: f32[2,128,128], index: 5, kind: output, shape index: {}]
  %s6 = sld [smem:[#allocation0]]
  $region77: #{stru_gnn_forward.1} parent=0
    _
  %s8 = ssub.s32 1, %s6
  %s9 = scalar_select 0, %s8, %s6
  %s10 = sshll.u32 %s0, 4
  %s11 = int_to_ptr.vmem [resolvable:$true] %s10
  %13 = dma.vmem_to_smem %s11, 16, [#allocation5], [#allocation4]
  %14 = dma.done [#allocation4], 16
  %15 = sfence
  loop: start=0, step=1, limit=6
  $region2: #{stru_gnn_forward.1} parent=0 // loop_pre_header
    _
  $region3: #{stru_gnn_forward.1} parent=0 // loop_header
    %s17 = sphi 0, %s21
    %p18 = scmp.ge.s32.totalorder %s17, 6
    %s24 = sphi 0, %s43
    %s25 = sphi 0, %s39
    %s26 = sphi 0, %s35
    %s27 = sphi 0, %s24
    %s28 = sphi 0, %s25
    %s29 = sphi 0, %s26
    %s30 = sphi 0, %s27
    %s31 = sphi 0, %s28
    %s32 = sphi 0, %s29
    %s46 = sphi 0, %s48
    %s49 = sphi 0, %s46
    %s50 = sphi 0, %s49
    %s66 = sphi 0, %s50
    %s72 = sphi 0, %s74
    %s75 = sphi 0, %s72
    %s76 = sphi 0, %s75
    %s92 = sphi 0, %s76
    %s98 = sphi 0, %s100
    %s101 = sphi 0, %s98
    %s102 = sphi 0, %s101
    %s118 = sphi 0, %s102
    %s124 = sphi 0, %s126
    %s127 = sphi 0, %s124
    %s128 = sphi 0, %s127
    %s144 = sphi 0, %s128
    %s152 = sphi 0, %s154
    %s155 = sphi 0, %s152
    %s156 = sphi 0, %s155
    %s172 = sphi 0, %s156
  $region4: #{stru_gnn_forward.1} parent=0 // loop_header_branch
    %20 = sbr.rel (%p18) target = $region8
  $region5: #{stru_gnn_forward.1} parent=0 // loop_body
    %s22 = ssub.s32 %s17, 1
    %s23 = ssub.s32 %s17, 2
    %s33 = sadd.s32 1, %s26
    %p34 = scmp.ge.s32.totalorder %s33, 1
    %s35 = scalar_select %p34, 0, %s33
    %s36 = sadd.s32 1, %s25
    %s37 = scalar_select %p34, %s36, %s25
    %p38 = scmp.ge.s32.totalorder %s37, 2
    %s39 = scalar_select %p38, 0, %s37
    %s40 = sadd.s32 1, %s24
    %s41 = scalar_select %p38, %s40, %s24
    %p42 = scmp.ge.s32.totalorder %s41, 2
    %s43 = scalar_select %p42, 0, %s41
    %s44 = ssub.s32 %s24, %s43
    %p45 = scmp.eq.s32.totalorder %s44, 0
    %s47 = sadd.s32 %s46, 1
    %s48 = scalar_select %p45, %s46, %s47
    %p51 = pneg %p45
    %p52 = scmp.eq.s32.totalorder %s17, 3
    %p53 = por %p51, %p52
    %p54 = scmp.ne.s32.totalorder %s46, %s49
    %p55 = scmp.eq.s32.totalorder %s17, 0
    %p56 = por %p54, %p55
    %p57 = scmp.ne.s32.totalorder %s46, %s49
    %p58 = scmp.eq.s32.totalorder %s22, 3
    %p59 = por %p57, %p58
    %p60 = scmp.ne.s32.totalorder %s49, %s50
    %p61 = scmp.eq.s32.totalorder %s22, 0
    %p62 = por %p60, %p61
    %p63 = scmp.ne.s32.totalorder %s49, %s50
    %p64 = scmp.eq.s32.totalorder %s23, 3
    %p65 = por %p63, %p64
    %p67 = scmp.ne.s32.totalorder %s50, %s66
    %p68 = scmp.eq.s32.totalorder %s23, 0
    %p69 = por %p67, %p68
    %s70 = ssub.s32 %s24, %s43
    %p71 = scmp.eq.s32.totalorder %s70, 0
    %s73 = sadd.s32 %s72, 1
    %s74 = scalar_select %p71, %s72, %s73
    %p77 = pneg %p71
    %p78 = scmp.eq.s32.totalorder %s17, 3
    %p79 = por %p77, %p78
    %p80 = scmp.ne.s32.totalorder %s72, %s75
    %p81 = scmp.eq.s32.totalorder %s17, 0
    %p82 = por %p80, %p81
    %p83 = scmp.ne.s32.totalorder %s72, %s75
    %p84 = scmp.eq.s32.totalorder %s22, 3
    %p85 = por %p83, %p84
    %p86 = scmp.ne.s32.totalorder %s75, %s76
    %p87 = scmp.eq.s32.totalorder %s22, 0
    %p88 = por %p86, %p87
    %p89 = scmp.ne.s32.totalorder %s75, %s76
    %p90 = scmp.eq.s32.totalorder %s23, 3
    %p91 = por %p89, %p90
    %p93 = scmp.ne.s32.totalorder %s76, %s92
    %p94 = scmp.eq.s32.totalorder %s23, 0
    %p95 = por %p93, %p94
    %s96 = ssub.s32 %s24, %s43
    %p97 = scmp.eq.s32.totalorder %s96, 0
    %s99 = sadd.s32 %s98, 1
    %s100 = scalar_select %p97, %s98, %s99
    %p103 = pneg %p97
    %p104 = scmp.eq.s32.totalorder %s17, 3
    %p105 = por %p103, %p104
    %p106 = scmp.ne.s32.totalorder %s98, %s101
    %p107 = scmp.eq.s32.totalorder %s17, 0
    %p108 = por %p106, %p107
    %p109 = scmp.ne.s32.totalorder %s98, %s101
    %p110 = scmp.eq.s32.totalorder %s22, 3
    %p111 = por %p109, %p110
    %p112 = scmp.ne.s32.totalorder %s101, %s102
    %p113 = scmp.eq.s32.totalorder %s22, 0
    %p114 = por %p112, %p113
    %p115 = scmp.ne.s32.totalorder %s101, %s102
    %p116 = scmp.eq.s32.totalorder %s23, 3
    %p117 = por %p115, %p116
    %p119 = scmp.ne.s32.totalorder %s102, %s118
    %p120 = scmp.eq.s32.totalorder %s23, 0
    %p121 = por %p119, %p120
    %s122 = ssub.s32 %s25, %s39
    %p123 = scmp.eq.s32.totalorder %s122, 0
    %s125 = sadd.s32 %s124, 1
    %s126 = scalar_select %p123, %s124, %s125
    %p129 = pneg %p123
    %p130 = scmp.eq.s32.totalorder %s17, 3
    %p131 = por %p129, %p130
    %p132 = scmp.ne.s32.totalorder %s124, %s127
    %p133 = scmp.eq.s32.totalorder %s17, 0
    %p134 = por %p132, %p133
    %p135 = scmp.ne.s32.totalorder %s124, %s127
    %p136 = scmp.eq.s32.totalorder %s22, 3
    %p137 = por %p135, %p136
    %p138 = scmp.ne.s32.totalorder %s127, %s128
    %p139 = scmp.eq.s32.totalorder %s22, 0
    %p140 = por %p138, %p139
    %p141 = scmp.ne.s32.totalorder %s127, %s128
    %p142 = scmp.eq.s32.totalorder %s23, 3
    %p143 = por %p141, %p142
    %p145 = scmp.ne.s32.totalorder %s128, %s144
    %p146 = scmp.eq.s32.totalorder %s23, 0
    %p147 = por %p145, %p146
    %s148 = ssub.s32 %s24, %s43
    %s149 = ssub.s32 %s26, %s35
    %s150 = sor.u32 %s148, %s149
    %p151 = scmp.eq.s32.totalorder %s150, 0
    %s153 = sadd.s32 %s152, 1
    %s154 = scalar_select %p151, %s152, %s153
    %p157 = pneg %p151
    %p158 = scmp.eq.s32.totalorder %s17, 3
    %p159 = por %p157, %p158
    %p160 = scmp.ne.s32.totalorder %s152, %s155
    %p161 = scmp.eq.s32.totalorder %s17, 0
    %p162 = por %p160, %p161
    %p163 = scmp.ne.s32.totalorder %s152, %s155
    %p164 = scmp.eq.s32.totalorder %s22, 3
    %p165 = por %p163, %p164
    %p166 = scmp.ne.s32.totalorder %s155, %s156
    %p167 = scmp.eq.s32.totalorder %s22, 0
    %p168 = por %p166, %p167
    %p169 = scmp.ne.s32.totalorder %s155, %s156
    %p170 = scmp.eq.s32.totalorder %s23, 3
    %p171 = por %p169, %p170
    %p173 = scmp.ne.s32.totalorder %s156, %s172
    %p174 = scmp.eq.s32.totalorder %s23, 0
    %p175 = por %p173, %p174
    %p176 = scmp.le.s32.totalorder 1, %s17
    %p177 = scmp.lt.s32.totalorder %s17, 5
    %p178 = pnand %p176, %p177
    %p179 = pneg %p178
    // Predicated region
    $region9: #{stru_gnn_forward.1} parent=5 // pred_check
      _
    $region10: #{stru_gnn_forward.1} parent=5 // pred_check_branch
      %181 = sbr.rel (%p178) target = $region12
    $region11: #{stru_gnn_forward.1} parent=5 // pred_region
      %s182 = ssub.s32 %s17, 1
    $region12: #{stru_gnn_forward.1} parent=5 // pred_fallthru
      _
    %p183 = scmp.lt.s32.totalorder %s17, 4
    // Predicated region
    $region13: #{stru_gnn_forward.1} parent=5 // pred_check
      %p184 = pneg %p183
    $region14: #{stru_gnn_forward.1} parent=5 // pred_check_branch
      %186 = sbr.rel (%p184) target = $region16
    $region15: #{stru_gnn_forward.1} parent=5 // pred_region
      // Predicated region
      $region17: #{stru_gnn_forward.1} parent=15 // pred_check
        %p187 = pneg %p56
      $region18: #{stru_gnn_forward.1} parent=15 // pred_check_branch
        %189 = sbr.rel (%p187) target = $region20
      $region19: #{stru_gnn_forward.1} parent=15 // pred_region
        %p190 = scmp.lt.s32.totalorder %s24, 1
        %s191 = scalar_select %p190, %s24, 1
        %s192 = smul.addr %s191, 16
        %s193 = smul.addr %s192, 4
        %s194 = scalar_lea.vmem %s1, %s193
      $region20: #{stru_gnn_forward.1} parent=15 // pred_fallthru
        _
      // Predicated region
      $region21: #{stru_gnn_forward.1} parent=15 // pred_check
        %p195 = pneg %p82
      $region22: #{stru_gnn_forward.1} parent=15 // pred_check_branch
        %197 = sbr.rel (%p195) target = $region24
      $region23: #{stru_gnn_forward.1} parent=15 // pred_region
        %p198 = scmp.lt.s32.totalorder %s24, 1
        %s199 = scalar_select %p198, %s24, 1
        %s200 = smul.addr %s199, 16
        %s201 = smul.addr %s200, 4
        %s202 = scalar_lea.vmem %s2, %s201
      $region24: #{stru_gnn_forward.1} parent=15 // pred_fallthru
        _
      // Predicated region
      $region25: #{stru_gnn_forward.1} parent=15 // pred_check
        %p203 = pneg %p108
      $region26: #{stru_gnn_forward.1} parent=15 // pred_check_branch
        %205 = sbr.rel (%p203) target = $region28
      $region27: #{stru_gnn_forward.1} parent=15 // pred_region
        %p206 = scmp.lt.s32.totalorder %s24, 1
        %s207 = scalar_select %p206, %s24, 1
        %s208 = smul.addr %s207, 16
        %s209 = smul.addr %s208, 8
        %s210 = scalar_lea.vmem %s3, %s209
      $region28: #{stru_gnn_forward.1} parent=15 // pred_fallthru
        _
      // Predicated region
      $region29: #{stru_gnn_forward.1} parent=15 // pred_check
        %p211 = pneg %p134
      $region30: #{stru_gnn_forward.1} parent=15 // pred_check_branch
        %213 = sbr.rel (%p211) target = $region32
      $region31: #{stru_gnn_forward.1} parent=15 // pred_region
        %p214 = scmp.lt.s32.totalorder %s25, 1
        %s215 = scalar_select %p214, %s25, 1
        %s216 = smul.addr %s215, 16
        %s217 = smul.addr %s216, 4
        %s218 = scalar_lea.vmem %s4, %s217
      $region32: #{stru_gnn_forward.1} parent=15 // pred_fallthru
        _
    $region16: #{stru_gnn_forward.1} parent=5 // pred_fallthru
      _
    %p219 = scmp.le.s32.totalorder 1, %s17
    %p220 = scmp.lt.s32.totalorder %s17, 5
    %p221 = pnand %p219, %p220
    %p222 = pneg %p221
    // Predicated region
    $region33: #{stru_gnn_forward.1} parent=5 // pred_check
      _
    $region34: #{stru_gnn_forward.1} parent=5 // pred_check_branch
      %224 = sbr.rel (%p221) target = $region36
    $region35: #{stru_gnn_forward.1} parent=5 // pred_region
      %s225 = ssub.s32 %s17, 1
      %p226 = scmp.lt.s32.totalorder %s27, 1
      %s227 = scalar_select %p226, %s27, 1
      %s228 = smul.addr %s227, 16
      %s229 = smul.addr %s228, 4
      %s230 = scalar_lea.vmem %s1, %s229
      %p231 = pneg %p62
      %p232 = pneg %p59
      %p233 = scmp.lt.s32.totalorder %s27, 1
      %s234 = scalar_select %p233, %s27, 1
      %s235 = smul.addr %s234, 16
      %s236 = smul.addr %s235, 4
      %s237 = scalar_lea.vmem %s2, %s236
      %p238 = pneg %p88
      %p239 = pneg %p85
      %p240 = scmp.lt.s32.totalorder %s27, 1
      %s241 = scalar_select %p240, %s27, 1
      %s242 = smul.addr %s241, 16
      %s243 = smul.addr %s242, 8
      %s244 = scalar_lea.vmem %s3, %s243
      %p245 = pneg %p114
      %p246 = pneg %p111
      %p247 = scmp.lt.s32.totalorder %s28, 1
      %s248 = scalar_select %p247, %s28, 1
      %s249 = smul.addr %s248, 16
      %s250 = smul.addr %s249, 4
      %s251 = scalar_lea.vmem %s4, %s250
      %p252 = pneg %p140
      %p253 = pneg %p137
      %p254 = pneg %p168
      %p255 = pneg %p165
      %s256 = smul.u32 16, %s29
      %p257 = scmp.lt.s32.totalorder %s27, 1
      %s258 = scalar_select %p257, %s27, 1
      %p259 = scmp.lt.s32.totalorder %s256, 15
      %s260 = scalar_select %p259, %s256, 15
      %s261 = smul.addr %s258, 16
      %s262 = sadd.s32 %s260, %s261
      %s263 = smul.addr %s262, 8
      %s264 = scalar_lea.vmem %s5, %s263
      %p265 = scmp.lt.s32.totalorder %s27, 1
      %s266 = scalar_select %p265, %s27, 1
      %s267 = smul.addr %s266, 16
      %s268 = smul.addr %s267, 4
      %s269 = scalar_lea.vmem %s1, %s268
      %p270 = scmp.lt.s32.totalorder %s27, 1
      %s271 = scalar_select %p270, %s27, 1
      %s272 = smul.addr %s271, 16
      %s273 = smul.addr %s272, 4
      %s274 = scalar_lea.vmem %s2, %s273
      %p275 = scmp.lt.s32.totalorder %s27, 1
      %s276 = scalar_select %p275, %s27, 1
      %s277 = smul.addr %s276, 16
      %s278 = smul.addr %s277, 8
      %s279 = scalar_lea.vmem %s3, %s278
      %p280 = scmp.lt.s32.totalorder %s28, 1
      %s281 = scalar_select %p280, %s28, 1
      %s282 = smul.addr %s281, 16
      %s283 = smul.addr %s282, 4
      %s284 = scalar_lea.vmem %s4, %s283
      %s285 = smul.u32 16, %s29
      %p286 = scmp.lt.s32.totalorder %s27, 1
      %s287 = scalar_select %p286, %s27, 1
      %p288 = scmp.lt.s32.totalorder %s285, 15
      %s289 = scalar_select %p288, %s285, 15
      %s290 = smul.addr %s287, 16
      %s291 = sadd.s32 %s289, %s290
      %s292 = smul.addr %s291, 8
      %s293 = scalar_lea.vmem %s5, %s292
      %s294 = smul.u32 16, %s29
      %s296 = smul.u32 %s29, 128
      %s297 = sld [smem:[#allocation5 + %s27]]
      %p298 = scmp.eq.s32.totalorder %s28, 0
      %p299 = scmp.eq.s32.totalorder %s29, 0
      %p300 = pnand %p298, %p299
      %p301 = pneg %p300
      // Predicated region
      $region37: #{stru_gnn_forward.1} parent=35 // pred_check
        _
      $region38: #{stru_gnn_forward.1} parent=35 // pred_check_branch
        %303 = sbr.rel (%p300) target = $region40
      $region39: #{stru_gnn_forward.1} parent=35 // pred_region
        %304 = vst [vmem:[#allocation3] sm:$0xff] 0
        %305 = vst [vmem:[#allocation3 + $0x8] sm:$0xff] 0
        %306 = vst [vmem:[#allocation3 + $0x10] sm:$0xff] 0
        %307 = vst [vmem:[#allocation3 + $0x18] sm:$0xff] 0
        %308 = vst [vmem:[#allocation3 + $0x20] sm:$0xff] 0
        %309 = vst [vmem:[#allocation3 + $0x28] sm:$0xff] 0
        %310 = vst [vmem:[#allocation3 + $0x30] sm:$0xff] 0
        %311 = vst [vmem:[#allocation3 + $0x38] sm:$0xff] 0
      $region40: #{stru_gnn_forward.1} parent=35 // pred_fallthru
        _
      // Predicated region
      $region41: #{stru_gnn_forward.1} parent=35 // pred_check
        %p312 = pneg %p299
      $region42: #{stru_gnn_forward.1} parent=35 // pred_check_branch
        %314 = sbr.rel (%p312) target = $region44
      $region43: #{stru_gnn_forward.1} parent=35 // pred_region
        %v315 = vld [vmem:[%s284] sm:$0xf]
        %v316 = vld [vmem:[%s284 + $0x4] sm:$0xf]
        %v317 = vld [vmem:[%s284 + $0x8] sm:$0xf]
        %v318 = vld [vmem:[%s284 + $0xc] sm:$0xf]
        %v319 = vld [vmem:[%s284 + $0x10] sm:$0xf]
        %v320 = vld [vmem:[%s284 + $0x14] sm:$0xf]
        %v321 = vld [vmem:[%s284 + $0x18] sm:$0xf]
        %v322 = vld [vmem:[%s284 + $0x1c] sm:$0xf]
        %v323 = vld [vmem:[%s284 + $0x20] sm:$0xf]
        %v324 = vld [vmem:[%s284 + $0x24] sm:$0xf]
        %v325 = vld [vmem:[%s284 + $0x28] sm:$0xf]
        %v326 = vld [vmem:[%s284 + $0x2c] sm:$0xf]
        %v327 = vld [vmem:[%s284 + $0x30] sm:$0xf]
        %v328 = vld [vmem:[%s284 + $0x34] sm:$0xf]
        %v329 = vld [vmem:[%s284 + $0x38] sm:$0xf]
        %v330 = vld [vmem:[%s284 + $0x3c] sm:$0xf]
        %v331 = vld [vmem:[%s279] sm:$0xff]
        %v332 = vld [vmem:[%s279 + $0x8] sm:$0xff]
        %v333 = vld [vmem:[%s279 + $0x10] sm:$0xff]
        %v334 = vld [vmem:[%s279 + $0x18] sm:$0xff]
        %v335 = vld [vmem:[%s279 + $0x20] sm:$0xff]
        %v336 = vld [vmem:[%s279 + $0x28] sm:$0xff]
        %v337 = vld [vmem:[%s279 + $0x30] sm:$0xff]
        %v338 = vld [vmem:[%s279 + $0x38] sm:$0xff]
        %v339 = vld [vmem:[%s279 + $0x40] sm:$0xff]
        %v340 = vld [vmem:[%s279 + $0x48] sm:$0xff]
        %v341 = vld [vmem:[%s279 + $0x50] sm:$0xff]
        %v342 = vld [vmem:[%s279 + $0x58] sm:$0xff]
        %v343 = vld [vmem:[%s279 + $0x60] sm:$0xff]
        %v344 = vld [vmem:[%s279 + $0x68] sm:$0xff]
        %v345 = vld [vmem:[%s279 + $0x70] sm:$0xff]
        %v346 = vld [vmem:[%s279 + $0x78] sm:$0xff]
        // Predicated region
        $region45: #{stru_gnn_forward.1} parent=43 // pred_check
          %p347 = pneg %p298
        $region46: #{stru_gnn_forward.1} parent=43 // pred_check_branch
          %349 = sbr.rel (%p347) target = $region48
        $region47: #{stru_gnn_forward.1} parent=43 // pred_region
          %v350 = vld [vmem:[%s274] sm:$0xf]
          %v351 = vld [vmem:[%s274 + $0x4] sm:$0xf]
          %v352 = vld [vmem:[%s274 + $0x8] sm:$0xf]
          %v353 = vld [vmem:[%s274 + $0xc] sm:$0xf]
          %v354 = vld [vmem:[%s274 + $0x10] sm:$0xf]
          %v355 = vld [vmem:[%s274 + $0x14] sm:$0xf]
          %v356 = vld [vmem:[%s274 + $0x18] sm:$0xf]
          %v357 = vld [vmem:[%s274 + $0x1c] sm:$0xf]
          %v358 = vld [vmem:[%s274 + $0x20] sm:$0xf]
          %v359 = vld [vmem:[%s274 + $0x24] sm:$0xf]
          %v360 = vld [vmem:[%s274 + $0x28] sm:$0xf]
          %v361 = vld [vmem:[%s274 + $0x2c] sm:$0xf]
          %v362 = vld [vmem:[%s274 + $0x30] sm:$0xf]
          %v363 = vld [vmem:[%s274 + $0x34] sm:$0xf]
          %v364 = vld [vmem:[%s274 + $0x38] sm:$0xf]
          %v365 = vld [vmem:[%s274 + $0x3c] sm:$0xf]
          %v366 = vunpack.c.l.bf16 %v350
          %v367 = vunpack.c.l.bf16 %v351
          %v368 = vunpack.c.l.bf16 %v352
          %v369 = vunpack.c.l.bf16 %v353
          %v370 = vunpack.c.l.bf16 %v354
          %v371 = vunpack.c.l.bf16 %v355
          %v372 = vunpack.c.l.bf16 %v356
          %v373 = vunpack.c.l.bf16 %v357
          %v374 = vunpack.c.l.bf16 %v358
          %v375 = vunpack.c.l.bf16 %v359
          %v376 = vunpack.c.l.bf16 %v360
          %v377 = vunpack.c.l.bf16 %v361
          %v378 = vunpack.c.l.bf16 %v362
          %v379 = vunpack.c.l.bf16 %v363
          %v380 = vunpack.c.l.bf16 %v364
          %v381 = vunpack.c.l.bf16 %v365
          %383 = vset.pattern.permute.xlu0 0
          %384 = vperm.xlu0 %383, %v331
          %v385 = vpop.permute.xlu0 %384
          %388 = vset.pattern.permute.xlu0 0
          %389 = vperm.xlu0 %388, %v332
          %v390 = vpop.permute.xlu0 %389
          %393 = vset.pattern.permute.xlu0 0
          %394 = vperm.xlu0 %393, %v333
          %v395 = vpop.permute.xlu0 %394
          %398 = vset.pattern.permute.xlu0 0
          %399 = vperm.xlu0 %398, %v334
          %v400 = vpop.permute.xlu0 %399
          %403 = vset.pattern.permute.xlu0 0
          %404 = vperm.xlu0 %403, %v335
          %v405 = vpop.permute.xlu0 %404
          %408 = vset.pattern.permute.xlu0 0
          %409 = vperm.xlu0 %408, %v336
          %v410 = vpop.permute.xlu0 %409
          %413 = vset.pattern.permute.xlu0 0
          %414 = vperm.xlu0 %413, %v337
          %v415 = vpop.permute.xlu0 %414
          %418 = vset.pattern.permute.xlu0 0
          %419 = vperm.xlu0 %418, %v338
          %v420 = vpop.permute.xlu0 %419
          %423 = vset.pattern.permute.xlu0 0
          %424 = vperm.xlu0 %423, %v339
          %v425 = vpop.permute.xlu0 %424
          %428 = vset.pattern.permute.xlu0 0
          %429 = vperm.xlu0 %428, %v340
          %v430 = vpop.permute.xlu0 %429
          %433 = vset.pattern.permute.xlu0 0
          %434 = vperm.xlu0 %433, %v341
          %v435 = vpop.permute.xlu0 %434
          %438 = vset.pattern.permute.xlu0 0
          %439 = vperm.xlu0 %438, %v342
          %v440 = vpop.permute.xlu0 %439
          %443 = vset.pattern.permute.xlu0 0
          %444 = vperm.xlu0 %443, %v343
          %v445 = vpop.permute.xlu0 %444
          %448 = vset.pattern.permute.xlu0 0
          %449 = vperm.xlu0 %448, %v344
          %v450 = vpop.permute.xlu0 %449
          %453 = vset.pattern.permute.xlu0 0
          %454 = vperm.xlu0 %453, %v345
          %v455 = vpop.permute.xlu0 %454
          %458 = vset.pattern.permute.xlu0 0
          %459 = vperm.xlu0 %458, %v346
          %v460 = vpop.permute.xlu0 %459
          %v462 = vmul.f32 %v366, %v385
          %v463 = vmul.f32 %v367, %v390
          %v464 = vmul.f32 %v368, %v395
          %v465 = vmul.f32 %v369, %v400
          %v466 = vmul.f32 %v370, %v405
          %v467 = vmul.f32 %v371, %v410
          %v468 = vmul.f32 %v372, %v415
          %v469 = vmul.f32 %v373, %v420
          %v470 = vmul.f32 %v374, %v425
          %v471 = vmul.f32 %v375, %v430
          %v472 = vmul.f32 %v376, %v435
          %v473 = vmul.f32 %v377, %v440
          %v474 = vmul.f32 %v378, %v445
          %v475 = vmul.f32 %v379, %v450
          %v476 = vmul.f32 %v380, %v455
          %v477 = vmul.f32 %v381, %v460
          %v478 = vpack.c.bf16 %v463, %v462
          %v479 = vpack.c.bf16 %v465, %v464
          %v480 = vpack.c.bf16 %v467, %v466
          %v481 = vpack.c.bf16 %v469, %v468
          %v482 = vpack.c.bf16 %v471, %v470
          %v483 = vpack.c.bf16 %v473, %v472
          %v484 = vpack.c.bf16 %v475, %v474
          %v485 = vpack.c.bf16 %v477, %v476
          %v502 = vunpack.c.l.b16 %v315
          %v503 = vunpack.c.l.b16 %v316
          %v504 = vunpack.c.l.b16 %v317
          %v505 = vunpack.c.l.b16 %v318
          %v506 = vunpack.c.l.b16 %v319
          %v507 = vunpack.c.l.b16 %v320
          %v508 = vunpack.c.l.b16 %v321
          %v509 = vunpack.c.l.b16 %v322
          %v510 = vunpack.c.l.b16 %v323
          %v511 = vunpack.c.l.b16 %v324
          %v512 = vunpack.c.l.b16 %v325
          %v513 = vunpack.c.l.b16 %v326
          %v514 = vunpack.c.l.b16 %v327
          %v515 = vunpack.c.l.b16 %v328
          %v516 = vunpack.c.l.b16 %v329
          %v517 = vunpack.c.l.b16 %v330
          %v518 = vpack.c.b16 %v503, %v502
          %v519 = vpack.c.b16 %v505, %v504
          %v520 = vpack.c.b16 %v507, %v506
          %v521 = vpack.c.b16 %v509, %v508
          %v522 = vpack.c.b16 %v511, %v510
          %v523 = vpack.c.b16 %v513, %v512
          %v524 = vpack.c.b16 %v515, %v514
          %v525 = vpack.c.b16 %v517, %v516
          %534 = vmatprep.subr.bf16.mxu0 0
          %535 = vmatpush1.bf16.msra.mxu0 %v518
          %536 = vmatprep.subr.bf16.mxu0 0
          %537 = vmatpush1.bf16.msra.mxu0 %v519
          %538 = vmatprep.subr.bf16.mxu0 0
          %539 = vmatpush1.bf16.msra.mxu0 %v520
          %540 = vmatprep.subr.bf16.mxu0 0
          %541 = vmatpush1.bf16.msra.mxu0 %v521
          %542 = vmatprep.subr.bf16.mxu0 0
          %543 = vmatpush1.bf16.msra.mxu0 %v522
          %544 = vmatprep.subr.bf16.mxu0 0
          %545 = vmatpush1.bf16.msra.mxu0 %v523
          %546 = vmatprep.subr.bf16.mxu0 0
          %547 = vmatpush1.bf16.msra.mxu0 %v524
          %548 = vmatprep.subr.bf16.mxu0 0
          %549 = vmatpush1.bf16.msra.mxu0 %v525
          %550 = vmatprep.subr.bf16.mxu0 0
          %551 = vmatpush1.bf16.msra.mxu0 0
          %552 = vmatprep.subr.bf16.mxu0 0
          %553 = vmatpush1.bf16.msra.mxu0 0
          %554 = vmatprep.subr.bf16.mxu0 0
          %555 = vmatpush1.bf16.msra.mxu0 0
          %556 = vmatprep.subr.bf16.mxu0 0
          %557 = vmatpush1.bf16.msra.mxu0 0
          %558 = vmatprep.subr.bf16.mxu0 0
          %559 = vmatpush1.bf16.msra.mxu0 0
          %560 = vmatprep.subr.bf16.mxu0 0
          %561 = vmatpush1.bf16.msra.mxu0 0
          %562 = vmatprep.subr.bf16.mxu0 0
          %563 = vmatpush1.bf16.msra.mxu0 0
          %564 = vmatprep.subr.bf16.mxu0 0
          %565 = vmatpush1.bf16.msra.mxu0 0
          %566 = vmatprep.mubr.bf16.mxu0 0
          %567 = vmatmul.mubr.bf16.gmra.mrb[0].mxu0 %v478
          %v568 = vpop.f32.mrb[0].mxu0
          %v569 = vadd.f32 0.0, %v568
          %v570 = vpop.f32.mrb[0].mxu0
          %v571 = vpop.f32.mrb[0].mxu0
          %v572 = vadd.f32 0.0, %v571
          %v573 = vpop.f32.mrb[0].mxu0
          %574 = vmatprep.mubr.bf16.mxu0 0
          %575 = vmatmul.mubr.bf16.gmra.mrb[0].mxu0 %v479
          %v576 = vpop.f32.mrb[0].mxu0
          %v577 = vadd.f32 0.0, %v576
          %v578 = vpop.f32.mrb[0].mxu0
          %v579 = vpop.f32.mrb[0].mxu0
          %v580 = vadd.f32 0.0, %v579
          %v581 = vpop.f32.mrb[0].mxu0
          %582 = vmatprep.mubr.bf16.mxu0 0
          %583 = vmatmul.mubr.bf16.gmra.mrb[0].mxu0 %v480
          %v584 = vpop.f32.mrb[0].mxu0
          %v585 = vadd.f32 0.0, %v584
          %v586 = vpop.f32.mrb[0].mxu0
          %v587 = vpop.f32.mrb[0].mxu0
          %v588 = vadd.f32 0.0, %v587
          %v589 = vpop.f32.mrb[0].mxu0
          %590 = vmatprep.mubr.bf16.mxu0 0
          %591 = vmatmul.mubr.bf16.gmra.mrb[0].mxu0 %v481
          %v592 = vpop.f32.mrb[0].mxu0
          %v593 = vadd.f32 0.0, %v592
          %v594 = vpop.f32.mrb[0].mxu0
          %v595 = vpop.f32.mrb[0].mxu0
          %v596 = vadd.f32 0.0, %v595
          %v597 = vpop.f32.mrb[0].mxu0
          %598 = vmatprep.mubr.bf16.mxu0 0
          %599 = vmatmul.mubr.bf16.gmra.mrb[0].mxu0 %v482
          %v600 = vpop.f32.mrb[0].mxu0
          %v601 = vadd.f32 0.0, %v600
          %v602 = vpop.f32.mrb[0].mxu0
          %v603 = vpop.f32.mrb[0].mxu0
          %v604 = vadd.f32 0.0, %v603
          %v605 = vpop.f32.mrb[0].mxu0
          %606 = vmatprep.mubr.bf16.mxu0 0
          %607 = vmatmul.mubr.bf16.gmra.mrb[0].mxu0 %v483
          %v608 = vpop.f32.mrb[0].mxu0
          %v609 = vadd.f32 0.0, %v608
          %v610 = vpop.f32.mrb[0].mxu0
          %v611 = vpop.f32.mrb[0].mxu0
          %v612 = vadd.f32 0.0, %v611
          %v613 = vpop.f32.mrb[0].mxu0
          %614 = vmatprep.mubr.bf16.mxu0 0
          %615 = vmatmul.mubr.bf16.gmra.mrb[0].mxu0 %v484
          %v616 = vpop.f32.mrb[0].mxu0
          %v617 = vadd.f32 0.0, %v616
          %v618 = vpop.f32.mrb[0].mxu0
          %v619 = vpop.f32.mrb[0].mxu0
          %v620 = vadd.f32 0.0, %v619
          %v621 = vpop.f32.mrb[0].mxu0
          %622 = vmatprep.mubr.bf16.mxu0 0
          %623 = vmatmul.mubr.bf16.gmra.mrb[0].mxu0 %v485
          %v624 = vpop.f32.mrb[0].mxu0
          %v625 = vadd.f32 0.0, %v624
          %v626 = vpop.f32.mrb[0].mxu0
          %v627 = vpop.f32.mrb[0].mxu0
          %v628 = vadd.f32 0.0, %v627
          %v629 = vpop.f32.mrb[0].mxu0
          %630 = vdwg.mxu0
          %v631 = vpack.c.bf16 %v572, %v569
          %v632 = vpack.c.bf16 %v580, %v577
          %v633 = vpack.c.bf16 %v588, %v585
          %v634 = vpack.c.bf16 %v596, %v593
          %v635 = vpack.c.bf16 %v604, %v601
          %v636 = vpack.c.bf16 %v612, %v609
          %v637 = vpack.c.bf16 %v620, %v617
          %v638 = vpack.c.bf16 %v628, %v625
          %639 = vst [vmem:[#allocation2] sm:$0xff] %v631
          %640 = vst [vmem:[#allocation2 + $0x8] sm:$0xff] %v632
          %641 = vst [vmem:[#allocation2 + $0x10] sm:$0xff] %v633
          %642 = vst [vmem:[#allocation2 + $0x18] sm:$0xff] %v634
          %643 = vst [vmem:[#allocation2 + $0x20] sm:$0xff] %v635
          %644 = vst [vmem:[#allocation2 + $0x28] sm:$0xff] %v636
          %645 = vst [vmem:[#allocation2 + $0x30] sm:$0xff] %v637
          %646 = vst [vmem:[#allocation2 + $0x38] sm:$0xff] %v638
        $region48: #{stru_gnn_forward.1} parent=43 // pred_fallthru
          _
        %p647 = scmp.gt.s32.totalorder %s28, 0
        // Predicated region
        $region49: #{stru_gnn_forward.1} parent=43 // pred_check
          %p648 = pneg %p647
        $region50: #{stru_gnn_forward.1} parent=43 // pred_check_branch
          %650 = sbr.rel (%p648) target = $region52
        $region51: #{stru_gnn_forward.1} parent=43 // pred_region
          %v651 = vld [vmem:[#allocation3] sm:$0xff]
          %v652 = vld [vmem:[#allocation3 + $0x8] sm:$0xff]
          %v653 = vld [vmem:[#allocation3 + $0x10] sm:$0xff]
          %v654 = vld [vmem:[#allocation3 + $0x18] sm:$0xff]
          %v655 = vld [vmem:[#allocation3 + $0x20] sm:$0xff]
          %v656 = vld [vmem:[#allocation3 + $0x28] sm:$0xff]
          %v657 = vld [vmem:[#allocation3 + $0x30] sm:$0xff]
          %v658 = vld [vmem:[#allocation3 + $0x38] sm:$0xff]
          %v659 = vunpack.c.l.bf16 %v651
          %v660 = vunpack.c.h.bf16 %v651
          %v661 = vunpack.c.l.bf16 %v652
          %v662 = vunpack.c.h.bf16 %v652
          %v663 = vunpack.c.l.bf16 %v653
          %v664 = vunpack.c.h.bf16 %v653
          %v665 = vunpack.c.l.bf16 %v654
          %v666 = vunpack.c.h.bf16 %v654
          %v667 = vunpack.c.l.bf16 %v655
          %v668 = vunpack.c.h.bf16 %v655
          %v669 = vunpack.c.l.bf16 %v656
          %v670 = vunpack.c.h.bf16 %v656
          %v671 = vunpack.c.l.bf16 %v657
          %v672 = vunpack.c.h.bf16 %v657
          %v673 = vunpack.c.l.bf16 %v658
          %v674 = vunpack.c.h.bf16 %v658
          %676 = vset.pattern.permute.xlu0 0
          %677 = vperm.xlu0 %676, %v331
          %v678 = vpop.permute.xlu0 %677
          %681 = vset.pattern.permute.xlu0 0
          %682 = vperm.xlu0 %681, %v332
          %v683 = vpop.permute.xlu0 %682
          %686 = vset.pattern.permute.xlu0 0
          %687 = vperm.xlu0 %686, %v333
          %v688 = vpop.permute.xlu0 %687
          %691 = vset.pattern.permute.xlu0 0
          %692 = vperm.xlu0 %691, %v334
          %v693 = vpop.permute.xlu0 %692
          %696 = vset.pattern.permute.xlu0 0
          %697 = vperm.xlu0 %696, %v335
          %v698 = vpop.permute.xlu0 %697
          %701 = vset.pattern.permute.xlu0 0
          %702 = vperm.xlu0 %701, %v336
          %v703 = vpop.permute.xlu0 %702
          %706 = vset.pattern.permute.xlu0 0
          %707 = vperm.xlu0 %706, %v337
          %v708 = vpop.permute.xlu0 %707
          %711 = vset.pattern.permute.xlu0 0
          %712 = vperm.xlu0 %711, %v338
          %v713 = vpop.permute.xlu0 %712
          %716 = vset.pattern.permute.xlu0 0
          %717 = vperm.xlu0 %716, %v339
          %v718 = vpop.permute.xlu0 %717
          %721 = vset.pattern.permute.xlu0 0
          %722 = vperm.xlu0 %721, %v340
          %v723 = vpop.permute.xlu0 %722
          %726 = vset.pattern.permute.xlu0 0
          %727 = vperm.xlu0 %726, %v341
          %v728 = vpop.permute.xlu0 %727
          %731 = vset.pattern.permute.xlu0 0
          %732 = vperm.xlu0 %731, %v342
          %v733 = vpop.permute.xlu0 %732
          %736 = vset.pattern.permute.xlu0 0
          %737 = vperm.xlu0 %736, %v343
          %v738 = vpop.permute.xlu0 %737
          %741 = vset.pattern.permute.xlu0 0
          %742 = vperm.xlu0 %741, %v344
          %v743 = vpop.permute.xlu0 %742
          %746 = vset.pattern.permute.xlu0 0
          %747 = vperm.xlu0 %746, %v345
          %v748 = vpop.permute.xlu0 %747
          %751 = vset.pattern.permute.xlu0 0
          %752 = vperm.xlu0 %751, %v346
          %v753 = vpop.permute.xlu0 %752
          %v755 = vmul.f32 %v659, %v678
          %v756 = vmul.f32 %v660, %v683
          %v757 = vmul.f32 %v661, %v688
          %v758 = vmul.f32 %v662, %v693
          %v759 = vmul.f32 %v663, %v698
          %v760 = vmul.f32 %v664, %v703
          %v761 = vmul.f32 %v665, %v708
          %v762 = vmul.f32 %v666, %v713
          %v763 = vmul.f32 %v667, %v718
          %v764 = vmul.f32 %v668, %v723
          %v765 = vmul.f32 %v669, %v728
          %v766 = vmul.f32 %v670, %v733
          %v767 = vmul.f32 %v671, %v738
          %v768 = vmul.f32 %v672, %v743
          %v769 = vmul.f32 %v673, %v748
          %v770 = vmul.f32 %v674, %v753
          %v771 = vpack.c.bf16 %v756, %v755
          %v772 = vpack.c.bf16 %v758, %v757
          %v773 = vpack.c.bf16 %v760, %v759
          %v774 = vpack.c.bf16 %v762, %v761
          %v775 = vpack.c.bf16 %v764, %v763
          %v776 = vpack.c.bf16 %v766, %v765
          %v777 = vpack.c.bf16 %v768, %v767
          %v778 = vpack.c.bf16 %v770, %v769
          %v795 = vunpack.c.l.b16 %v315
          %v796 = vunpack.c.l.b16 %v316
          %v797 = vunpack.c.l.b16 %v317
          %v798 = vunpack.c.l.b16 %v318
          %v799 = vunpack.c.l.b16 %v319
          %v800 = vunpack.c.l.b16 %v320
          %v801 = vunpack.c.l.b16 %v321
          %v802 = vunpack.c.l.b16 %v322
          %v803 = vunpack.c.l.b16 %v323
          %v804 = vunpack.c.l.b16 %v324
          %v805 = vunpack.c.l.b16 %v325
          %v806 = vunpack.c.l.b16 %v326
          %v807 = vunpack.c.l.b16 %v327
          %v808 = vunpack.c.l.b16 %v328
          %v809 = vunpack.c.l.b16 %v329
          %v810 = vunpack.c.l.b16 %v330
          %v811 = vpack.c.b16 %v796, %v795
          %v812 = vpack.c.b16 %v798, %v797
          %v813 = vpack.c.b16 %v800, %v799
          %v814 = vpack.c.b16 %v802, %v801
          %v815 = vpack.c.b16 %v804, %v803
          %v816 = vpack.c.b16 %v806, %v805
          %v817 = vpack.c.b16 %v808, %v807
          %v818 = vpack.c.b16 %v810, %v809
          %827 = vmatprep.subr.bf16.mxu0 0
          %828 = vmatpush1.bf16.msra.mxu0 %v811
          %829 = vmatprep.subr.bf16.mxu0 0
          %830 = vmatpush1.bf16.msra.mxu0 %v812
          %831 = vmatprep.subr.bf16.mxu0 0
          %832 = vmatpush1.bf16.msra.mxu0 %v813
          %833 = vmatprep.subr.bf16.mxu0 0
          %834 = vmatpush1.bf16.msra.mxu0 %v814
          %835 = vmatprep.subr.bf16.mxu0 0
          %836 = vmatpush1.bf16.msra.mxu0 %v815
          %837 = vmatprep.subr.bf16.mxu0 0
          %838 = vmatpush1.bf16.msra.mxu0 %v816
          %839 = vmatprep.subr.bf16.mxu0 0
          %840 = vmatpush1.bf16.msra.mxu0 %v817
          %841 = vmatprep.subr.bf16.mxu0 0
          %842 = vmatpush1.bf16.msra.mxu0 %v818
          %843 = vmatprep.subr.bf16.mxu0 0
          %844 = vmatpush1.bf16.msra.mxu0 0
          %845 = vmatprep.subr.bf16.mxu0 0
          %846 = vmatpush1.bf16.msra.mxu0 0
          %847 = vmatprep.subr.bf16.mxu0 0
          %848 = vmatpush1.bf16.msra.mxu0 0
          %849 = vmatprep.subr.bf16.mxu0 0
          %850 = vmatpush1.bf16.msra.mxu0 0
          %851 = vmatprep.subr.bf16.mxu0 0
          %852 = vmatpush1.bf16.msra.mxu0 0
          %853 = vmatprep.subr.bf16.mxu0 0
          %854 = vmatpush1.bf16.msra.mxu0 0
          %855 = vmatprep.subr.bf16.mxu0 0
          %856 = vmatpush1.bf16.msra.mxu0 0
          %857 = vmatprep.subr.bf16.mxu0 0
          %858 = vmatpush1.bf16.msra.mxu0 0
          %859 = vmatprep.mubr.bf16.mxu0 0
          %860 = vmatmul.mubr.bf16.gmra.mrb[0].mxu0 %v771
          %v861 = vpop.f32.mrb[0].mxu0
          %v862 = vadd.f32 0.0, %v861
          %v863 = vpop.f32.mrb[0].mxu0
          %v864 = vpop.f32.mrb[0].mxu0
          %v865 = vadd.f32 0.0, %v864
          %v866 = vpop.f32.mrb[0].mxu0
          %867 = vmatprep.mubr.bf16.mxu0 0
          %868 = vmatmul.mubr.bf16.gmra.mrb[0].mxu0 %v772
          %v869 = vpop.f32.mrb[0].mxu0
          %v870 = vadd.f32 0.0, %v869
          %v871 = vpop.f32.mrb[0].mxu0
          %v872 = vpop.f32.mrb[0].mxu0
          %v873 = vadd.f32 0.0, %v872
          %v874 = vpop.f32.mrb[0].mxu0
          %875 = vmatprep.mubr.bf16.mxu0 0
          %876 = vmatmul.mubr.bf16.gmra.mrb[0].mxu0 %v773
          %v877 = vpop.f32.mrb[0].mxu0
          %v878 = vadd.f32 0.0, %v877
          %v879 = vpop.f32.mrb[0].mxu0
          %v880 = vpop.f32.mrb[0].mxu0
          %v881 = vadd.f32 0.0, %v880
          %v882 = vpop.f32.mrb[0].mxu0
          %883 = vmatprep.mubr.bf16.mxu0 0
          %884 = vmatmul.mubr.bf16.gmra.mrb[0].mxu0 %v774
          %v885 = vpop.f32.mrb[0].mxu0
          %v886 = vadd.f32 0.0, %v885
          %v887 = vpop.f32.mrb[0].mxu0
          %v888 = vpop.f32.mrb[0].mxu0
          %v889 = vadd.f32 0.0, %v888
          %v890 = vpop.f32.mrb[0].mxu0
          %891 = vmatprep.mubr.bf16.mxu0 0
          %892 = vmatmul.mubr.bf16.gmra.mrb[0].mxu0 %v775
          %v893 = vpop.f32.mrb[0].mxu0
          %v894 = vadd.f32 0.0, %v893
          %v895 = vpop.f32.mrb[0].mxu0
          %v896 = vpop.f32.mrb[0].mxu0
          %v897 = vadd.f32 0.0, %v896
          %v898 = vpop.f32.mrb[0].mxu0
          %899 = vmatprep.mubr.bf16.mxu0 0
          %900 = vmatmul.mubr.bf16.gmra.mrb[0].mxu0 %v776
          %v901 = vpop.f32.mrb[0].mxu0
          %v902 = vadd.f32 0.0, %v901
          %v903 = vpop.f32.mrb[0].mxu0
          %v904 = vpop.f32.mrb[0].mxu0
          %v905 = vadd.f32 0.0, %v904
          %v906 = vpop.f32.mrb[0].mxu0
          %907 = vmatprep.mubr.bf16.mxu0 0
          %908 = vmatmul.mubr.bf16.gmra.mrb[0].mxu0 %v777
          %v909 = vpop.f32.mrb[0].mxu0
          %v910 = vadd.f32 0.0, %v909
          %v911 = vpop.f32.mrb[0].mxu0
          %v912 = vpop.f32.mrb[0].mxu0
          %v913 = vadd.f32 0.0, %v912
          %v914 = vpop.f32.mrb[0].mxu0
          %915 = vmatprep.mubr.bf16.mxu0 0
          %916 = vmatmul.mubr.bf16.gmra.mrb[0].mxu0 %v778
          %v917 = vpop.f32.mrb[0].mxu0
          %v918 = vadd.f32 0.0, %v917
          %v919 = vpop.f32.mrb[0].mxu0
          %v920 = vpop.f32.mrb[0].mxu0
          %v921 = vadd.f32 0.0, %v920
          %v922 = vpop.f32.mrb[0].mxu0
          %923 = vdwg.mxu0
          %v924 = vpack.c.bf16 %v865, %v862
          %v925 = vpack.c.bf16 %v873, %v870
          %v926 = vpack.c.bf16 %v881, %v878
          %v927 = vpack.c.bf16 %v889, %v886
          %v928 = vpack.c.bf16 %v897, %v894
          %v929 = vpack.c.bf16 %v905, %v902
          %v930 = vpack.c.bf16 %v913, %v910
          %v931 = vpack.c.bf16 %v921, %v918
          %932 = vst [vmem:[#allocation2] sm:$0xff] %v924
          %933 = vst [vmem:[#allocation2 + $0x8] sm:$0xff] %v925
          %934 = vst [vmem:[#allocation2 + $0x10] sm:$0xff] %v926
          %935 = vst [vmem:[#allocation2 + $0x18] sm:$0xff] %v927
          %936 = vst [vmem:[#allocation2 + $0x20] sm:$0xff] %v928
          %937 = vst [vmem:[#allocation2 + $0x28] sm:$0xff] %v929
          %938 = vst [vmem:[#allocation2 + $0x30] sm:$0xff] %v930
          %939 = vst [vmem:[#allocation2 + $0x38] sm:$0xff] %v931
        $region52: #{stru_gnn_forward.1} parent=43 // pred_fallthru
          _
      $region44: #{stru_gnn_forward.1} parent=35 // pred_fallthru
        _
      %p940 = scmp.lt.s32.totalorder %s296, %s297
      // Predicated region
      $region53: #{stru_gnn_forward.1} parent=35 // pred_check
        %p941 = pneg %p940
      $region54: #{stru_gnn_forward.1} parent=35 // pred_check_branch
        %943 = sbr.rel (%p941) target = $region56
      $region55: #{stru_gnn_forward.1} parent=35 // pred_region
        %s944 = sshra.s32 %s296, 3
        %s945 = sand.u32 %s296, 7
        %s946 = smul.addr %s944, 4
        %s947 = scalar_lea.vmem %s269, %s946
        %v948 = vld [vmem:[%s947] sm:$0xf]
        %v949 = vld [vmem:[%s947 + $0x4] sm:$0xf]
        %v950 = vld [vmem:[%s947 + $0x8] sm:$0xf]
        %v951 = vld [vmem:[%s947 + $0xc] sm:$0xf]
        %v952 = vld [vmem:[%s947 + $0x10] sm:$0xf]
        %v953 = vld [vmem:[%s947 + $0x14] sm:$0xf]
        %v954 = vld [vmem:[%s947 + $0x18] sm:$0xf]
        %v955 = vld [vmem:[%s947 + $0x1c] sm:$0xf]
        %v956 = vld [vmem:[%s947 + $0x20] sm:$0xf]
        %v957 = vld [vmem:[%s947 + $0x24] sm:$0xf]
        %v958 = vld [vmem:[%s947 + $0x28] sm:$0xf]
        %v959 = vld [vmem:[%s947 + $0x2c] sm:$0xf]
        %v960 = vld [vmem:[%s947 + $0x30] sm:$0xf]
        %v961 = vld [vmem:[%s947 + $0x34] sm:$0xf]
        %v962 = vld [vmem:[%s947 + $0x38] sm:$0xf]
        %v963 = vld [vmem:[%s947 + $0x3c] sm:$0xf]
        %v964 = vld [vmem:[#allocation2] sm:$0xff]
        %v965 = vld [vmem:[#allocation2 + $0x8] sm:$0xff]
        %v966 = vld [vmem:[#allocation2 + $0x10] sm:$0xff]
        %v967 = vld [vmem:[#allocation2 + $0x18] sm:$0xff]
        %v968 = vld [vmem:[#allocation2 + $0x20] sm:$0xff]
        %v969 = vld [vmem:[#allocation2 + $0x28] sm:$0xff]
        %v970 = vld [vmem:[#allocation2 + $0x30] sm:$0xff]
        %v971 = vld [vmem:[#allocation2 + $0x38] sm:$0xff]
        %v988 = vunpack.c.l.b16 %v948
        %v989 = vunpack.c.l.b16 %v949
        %v990 = vunpack.c.l.b16 %v950
        %v991 = vunpack.c.l.b16 %v951
        %v992 = vunpack.c.l.b16 %v952
        %v993 = vunpack.c.l.b16 %v953
        %v994 = vunpack.c.l.b16 %v954
        %v995 = vunpack.c.l.b16 %v955
        %v996 = vunpack.c.l.b16 %v956
        %v997 = vunpack.c.l.b16 %v957
        %v998 = vunpack.c.l.b16 %v958
        %v999 = vunpack.c.l.b16 %v959
        %v1000 = vunpack.c.l.b16 %v960
        %v1001 = vunpack.c.l.b16 %v961
        %v1002 = vunpack.c.l.b16 %v962
        %v1003 = vunpack.c.l.b16 %v963
        %v1004 = vpack.c.b16 %v989, %v988
        %v1005 = vpack.c.b16 %v991, %v990
        %v1006 = vpack.c.b16 %v993, %v992
        %v1007 = vpack.c.b16 %v995, %v994
        %v1008 = vpack.c.b16 %v997, %v996
        %v1009 = vpack.c.b16 %v999, %v998
        %v1010 = vpack.c.b16 %v1001, %v1000
        %v1011 = vpack.c.b16 %v1003, %v1002
        %1020 = vmatprep.subr.bf16.mxu0 0
        %1021 = vmatpush1.bf16.msra.mxu0 %v964
        %1022 = vmatprep.subr.bf16.mxu0 0
        %1023 = vmatpush1.bf16.msra.mxu0 %v965
        %1024 = vmatprep.subr.bf16.mxu0 0
        %1025 = vmatpush1.bf16.msra.mxu0 %v966
        %1026 = vmatprep.subr.bf16.mxu0 0
        %1027 = vmatpush1.bf16.msra.mxu0 %v967
        %1028 = vmatprep.subr.bf16.mxu0 0
        %1029 = vmatpush1.bf16.msra.mxu0 %v968
        %1030 = vmatprep.subr.bf16.mxu0 0
        %1031 = vmatpush1.bf16.msra.mxu0 %v969
        %1032 = vmatprep.subr.bf16.mxu0 0
        %1033 = vmatpush1.bf16.msra.mxu0 %v970
        %1034 = vmatprep.subr.bf16.mxu0 0
        %1035 = vmatpush1.bf16.msra.mxu0 %v971
        %1036 = vmatprep.subr.bf16.mxu0 0
        %1037 = vmatpush1.bf16.msra.mxu0 0
        %1038 = vmatprep.subr.bf16.mxu0 0
        %1039 = vmatpush1.bf16.msra.mxu0 0
        %1040 = vmatprep.subr.bf16.mxu0 0
        %1041 = vmatpush1.bf16.msra.mxu0 0
        %1042 = vmatprep.subr.bf16.mxu0 0
        %1043 = vmatpush1.bf16.msra.mxu0 0
        %1044 = vmatprep.subr.bf16.mxu0 0
        %1045 = vmatpush1.bf16.msra.mxu0 0
        %1046 = vmatprep.subr.bf16.mxu0 0
        %1047 = vmatpush1.bf16.msra.mxu0 0
        %1048 = vmatprep.subr.bf16.mxu0 0
        %1049 = vmatpush1.bf16.msra.mxu0 0
        %1050 = vmatprep.subr.bf16.mxu0 0
        %1051 = vmatpush1.bf16.msra.mxu0 0
        %1052 = vmatprep.mubr.bf16.mxu0 0
        %1053 = vmatmul.mubr.bf16.gmra.mrb[0].mxu0 %v1004
        %v1054 = vpop.f32.mrb[0].mxu0
        %v1055 = vadd.f32 0.0, %v1054
        %v1056 = vpop.f32.mrb[0].mxu0
        %v1057 = vpop.f32.mrb[0].mxu0
        %v1058 = vadd.f32 0.0, %v1057
        %v1059 = vpop.f32.mrb[0].mxu0
        %1060 = vmatprep.mubr.bf16.mxu0 0
        %1061 = vmatmul.mubr.bf16.gmra.mrb[0].mxu0 %v1005
        %v1062 = vpop.f32.mrb[0].mxu0
        %v1063 = vadd.f32 0.0, %v1062
        %v1064 = vpop.f32.mrb[0].mxu0
        %v1065 = vpop.f32.mrb[0].mxu0
        %v1066 = vadd.f32 0.0, %v1065
        %v1067 = vpop.f32.mrb[0].mxu0
        %1068 = vmatprep.mubr.bf16.mxu0 0
        %1069 = vmatmul.mubr.bf16.gmra.mrb[0].mxu0 %v1006
        %v1070 = vpop.f32.mrb[0].mxu0
        %v1071 = vadd.f32 0.0, %v1070
        %v1072 = vpop.f32.mrb[0].mxu0
        %v1073 = vpop.f32.mrb[0].mxu0
        %v1074 = vadd.f32 0.0, %v1073
        %v1075 = vpop.f32.mrb[0].mxu0
        %1076 = vmatprep.mubr.bf16.mxu0 0
        %1077 = vmatmul.mubr.bf16.gmra.mrb[0].mxu0 %v1007
        %v1078 = vpop.f32.mrb[0].mxu0
        %v1079 = vadd.f32 0.0, %v1078
        %v1080 = vpop.f32.mrb[0].mxu0
        %v1081 = vpop.f32.mrb[0].mxu0
        %v1082 = vadd.f32 0.0, %v1081
        %v1083 = vpop.f32.mrb[0].mxu0
        %1084 = vmatprep.mubr.bf16.mxu0 0
        %1085 = vmatmul.mubr.bf16.gmra.mrb[0].mxu0 %v1008
        %v1086 = vpop.f32.mrb[0].mxu0
        %v1087 = vadd.f32 0.0, %v1086
        %v1088 = vpop.f32.mrb[0].mxu0
        %v1089 = vpop.f32.mrb[0].mxu0
        %v1090 = vadd.f32 0.0, %v1089
        %v1091 = vpop.f32.mrb[0].mxu0
        %1092 = vmatprep.mubr.bf16.mxu0 0
        %1093 = vmatmul.mubr.bf16.gmra.mrb[0].mxu0 %v1009
        %v1094 = vpop.f32.mrb[0].mxu0
        %v1095 = vadd.f32 0.0, %v1094
        %v1096 = vpop.f32.mrb[0].mxu0
        %v1097 = vpop.f32.mrb[0].mxu0
        %v1098 = vadd.f32 0.0, %v1097
        %v1099 = vpop.f32.mrb[0].mxu0
        %1100 = vmatprep.mubr.bf16.mxu0 0
        %1101 = vmatmul.mubr.bf16.gmra.mrb[0].mxu0 %v1010
        %v1102 = vpop.f32.mrb[0].mxu0
        %v1103 = vadd.f32 0.0, %v1102
        %v1104 = vpop.f32.mrb[0].mxu0
        %v1105 = vpop.f32.mrb[0].mxu0
        %v1106 = vadd.f32 0.0, %v1105
        %v1107 = vpop.f32.mrb[0].mxu0
        %1108 = vmatprep.mubr.bf16.mxu0 0
        %1109 = vmatmul.mubr.bf16.gmra.mrb[0].mxu0 %v1011
        %v1110 = vpop.f32.mrb[0].mxu0
        %v1111 = vadd.f32 0.0, %v1110
        %v1112 = vpop.f32.mrb[0].mxu0
        %v1113 = vpop.f32.mrb[0].mxu0
        %v1114 = vadd.f32 0.0, %v1113
        %v1115 = vpop.f32.mrb[0].mxu0
        %1116 = vdwg.mxu0
        %s1117 = scalar_lea.vmem %s279, %s296
        %v1118 = vld [vmem:[%s1117] sm:$0xff]
        %v1119 = vld [vmem:[%s1117 + $0x8] sm:$0xff]
        %v1120 = vld [vmem:[%s1117 + $0x10] sm:$0xff]
        %v1121 = vld [vmem:[%s1117 + $0x18] sm:$0xff]
        %v1122 = vld [vmem:[%s1117 + $0x20] sm:$0xff]
        %v1123 = vld [vmem:[%s1117 + $0x28] sm:$0xff]
        %v1124 = vld [vmem:[%s1117 + $0x30] sm:$0xff]
        %v1125 = vld [vmem:[%s1117 + $0x38] sm:$0xff]
        %v1126 = vld [vmem:[%s1117 + $0x40] sm:$0xff]
        %v1127 = vld [vmem:[%s1117 + $0x48] sm:$0xff]
        %v1128 = vld [vmem:[%s1117 + $0x50] sm:$0xff]
        %v1129 = vld [vmem:[%s1117 + $0x58] sm:$0xff]
        %v1130 = vld [vmem:[%s1117 + $0x60] sm:$0xff]
        %v1131 = vld [vmem:[%s1117 + $0x68] sm:$0xff]
        %v1132 = vld [vmem:[%s1117 + $0x70] sm:$0xff]
        %v1133 = vld [vmem:[%s1117 + $0x78] sm:$0xff]
        %1135 = vset.pattern.permute.xlu0 0
        %1136 = vperm.xlu0 %1135, %v1118
        %v1137 = vpop.permute.xlu0 %1136
        %1140 = vset.pattern.permute.xlu0 0
        %1141 = vperm.xlu0 %1140, %v1119
        %v1142 = vpop.permute.xlu0 %1141
        %1145 = vset.pattern.permute.xlu0 0
        %1146 = vperm.xlu0 %1145, %v1120
        %v1147 = vpop.permute.xlu0 %1146
        %1150 = vset.pattern.permute.xlu0 0
        %1151 = vperm.xlu0 %1150, %v1121
        %v1152 = vpop.permute.xlu0 %1151
        %1155 = vset.pattern.permute.xlu0 0
        %1156 = vperm.xlu0 %1155, %v1122
        %v1157 = vpop.permute.xlu0 %1156
        %1160 = vset.pattern.permute.xlu0 0
        %1161 = vperm.xlu0 %1160, %v1123
        %v1162 = vpop.permute.xlu0 %1161
        %1165 = vset.pattern.permute.xlu0 0
        %1166 = vperm.xlu0 %1165, %v1124
        %v1167 = vpop.permute.xlu0 %1166
        %1170 = vset.pattern.permute.xlu0 0
        %1171 = vperm.xlu0 %1170, %v1125
        %v1172 = vpop.permute.xlu0 %1171
        %1175 = vset.pattern.permute.xlu0 0
        %1176 = vperm.xlu0 %1175, %v1126
        %v1177 = vpop.permute.xlu0 %1176
        %1180 = vset.pattern.permute.xlu0 0
        %1181 = vperm.xlu0 %1180, %v1127
        %v1182 = vpop.permute.xlu0 %1181
        %1185 = vset.pattern.permute.xlu0 0
        %1186 = vperm.xlu0 %1185, %v1128
        %v1187 = vpop.permute.xlu0 %1186
        %1190 = vset.pattern.permute.xlu0 0
        %1191 = vperm.xlu0 %1190, %v1129
        %v1192 = vpop.permute.xlu0 %1191
        %1195 = vset.pattern.permute.xlu0 0
        %1196 = vperm.xlu0 %1195, %v1130
        %v1197 = vpop.permute.xlu0 %1196
        %1200 = vset.pattern.permute.xlu0 0
        %1201 = vperm.xlu0 %1200, %v1131
        %v1202 = vpop.permute.xlu0 %1201
        %1205 = vset.pattern.permute.xlu0 0
        %1206 = vperm.xlu0 %1205, %v1132
        %v1207 = vpop.permute.xlu0 %1206
        %1210 = vset.pattern.permute.xlu0 0
        %1211 = vperm.xlu0 %1210, %v1133
        %v1212 = vpop.permute.xlu0 %1211
        %v1214 = vmul.f32 %v1055, %v1137
        %v1215 = vmul.f32 %v1058, %v1142
        %v1216 = vmul.f32 %v1063, %v1147
        %v1217 = vmul.f32 %v1066, %v1152
        %v1218 = vmul.f32 %v1071, %v1157
        %v1219 = vmul.f32 %v1074, %v1162
        %v1220 = vmul.f32 %v1079, %v1167
        %v1221 = vmul.f32 %v1082, %v1172
        %v1222 = vmul.f32 %v1087, %v1177
        %v1223 = vmul.f32 %v1090, %v1182
        %v1224 = vmul.f32 %v1095, %v1187
        %v1225 = vmul.f32 %v1098, %v1192
        %v1226 = vmul.f32 %v1103, %v1197
        %v1227 = vmul.f32 %v1106, %v1202
        %v1228 = vmul.f32 %v1111, %v1207
        %v1229 = vmul.f32 %v1114, %v1212
        %p1230 = scmp.lt.s32.totalorder %s28, 1
        // Predicated region
        $region57: #{stru_gnn_forward.1} parent=55 // pred_check
          %p1231 = pneg %p1230
        $region58: #{stru_gnn_forward.1} parent=55 // pred_check_branch
          %1233 = sbr.rel (%p1231) target = $region60
        $region59: #{stru_gnn_forward.1} parent=55 // pred_region
          %v1234 = vmax.f32 %v1214, 0.0
          %v1235 = vmax.f32 %v1215, 0.0
          %v1236 = vmax.f32 %v1216, 0.0
          %v1237 = vmax.f32 %v1217, 0.0
          %v1238 = vmax.f32 %v1218, 0.0
          %v1239 = vmax.f32 %v1219, 0.0
          %v1240 = vmax.f32 %v1220, 0.0
          %v1241 = vmax.f32 %v1221, 0.0
          %v1242 = vmax.f32 %v1222, 0.0
          %v1243 = vmax.f32 %v1223, 0.0
          %v1244 = vmax.f32 %v1224, 0.0
          %v1245 = vmax.f32 %v1225, 0.0
          %v1246 = vmax.f32 %v1226, 0.0
          %v1247 = vmax.f32 %v1227, 0.0
          %v1248 = vmax.f32 %v1228, 0.0
          %v1249 = vmax.f32 %v1229, 0.0
          %v1250 = vpack.c.bf16 %v1235, %v1234
          %v1251 = vpack.c.bf16 %v1237, %v1236
          %v1252 = vpack.c.bf16 %v1239, %v1238
          %v1253 = vpack.c.bf16 %v1241, %v1240
          %v1254 = vpack.c.bf16 %v1243, %v1242
          %v1255 = vpack.c.bf16 %v1245, %v1244
          %v1256 = vpack.c.bf16 %v1247, %v1246
          %v1257 = vpack.c.bf16 %v1249, %v1248
          %s1258 = sshra.s32 %s296, 4
          %s1259 = sand.u32 %s296, 15
          %s1260 = smul.addr %s1258, 8
          %s1261 = scalar_lea.vmem [#allocation3], %s1260
          %1262 = vst [vmem:[%s1261] sm:$0xff] %v1250
          %1263 = vst [vmem:[%s1261 + $0x8] sm:$0xff] %v1251
          %1264 = vst [vmem:[%s1261 + $0x10] sm:$0xff] %v1252
          %1265 = vst [vmem:[%s1261 + $0x18] sm:$0xff] %v1253
          %1266 = vst [vmem:[%s1261 + $0x20] sm:$0xff] %v1254
          %1267 = vst [vmem:[%s1261 + $0x28] sm:$0xff] %v1255
          %1268 = vst [vmem:[%s1261 + $0x30] sm:$0xff] %v1256
          %1269 = vst [vmem:[%s1261 + $0x38] sm:$0xff] %v1257
        $region60: #{stru_gnn_forward.1} parent=55 // pred_fallthru
          _
        %p1270 = scmp.eq.s32.totalorder %s28, 1
        // Predicated region
        $region61: #{stru_gnn_forward.1} parent=55 // pred_check
          %p1271 = pneg %p1270
        $region62: #{stru_gnn_forward.1} parent=55 // pred_check_branch
          %1273 = sbr.rel (%p1271) target = $region64
        $region63: #{stru_gnn_forward.1} parent=55 // pred_region
          %v1274 = vmul.f32 %v1214, %v1214
          %v1275 = vmul.f32 %v1215, %v1215
          %v1276 = vmul.f32 %v1216, %v1216
          %v1277 = vmul.f32 %v1217, %v1217
          %v1278 = vmul.f32 %v1218, %v1218
          %v1279 = vmul.f32 %v1219, %v1219
          %v1280 = vmul.f32 %v1220, %v1220
          %v1281 = vmul.f32 %v1221, %v1221
          %v1282 = vmul.f32 %v1222, %v1222
          %v1283 = vmul.f32 %v1223, %v1223
          %v1284 = vmul.f32 %v1224, %v1224
          %v1285 = vmul.f32 %v1225, %v1225
          %v1286 = vmul.f32 %v1226, %v1226
          %v1287 = vmul.f32 %v1227, %v1227
          %v1288 = vmul.f32 %v1228, %v1228
          %v1289 = vmul.f32 %v1229, %v1229
          %1290 = vadd.xlane.f32.xlu0 %v1274
          %v1291 = vpop.xlane.xlu0 %1290
          %1292 = vadd.xlane.f32.xlu0 %v1275
          %v1293 = vpop.xlane.xlu0 %1292
          %1294 = vadd.xlane.f32.xlu0 %v1276
          %v1295 = vpop.xlane.xlu0 %1294
          %1296 = vadd.xlane.f32.xlu0 %v1277
          %v1297 = vpop.xlane.xlu0 %1296
          %1298 = vadd.xlane.f32.xlu0 %v1278
          %v1299 = vpop.xlane.xlu0 %1298
          %1300 = vadd.xlane.f32.xlu0 %v1279
          %v1301 = vpop.xlane.xlu0 %1300
          %1302 = vadd.xlane.f32.xlu0 %v1280
          %v1303 = vpop.xlane.xlu0 %1302
          %1304 = vadd.xlane.f32.xlu0 %v1281
          %v1305 = vpop.xlane.xlu0 %1304
          %1306 = vadd.xlane.f32.xlu0 %v1282
          %v1307 = vpop.xlane.xlu0 %1306
          %1308 = vadd.xlane.f32.xlu0 %v1283
          %v1309 = vpop.xlane.xlu0 %1308
          %1310 = vadd.xlane.f32.xlu0 %v1284
          %v1311 = vpop.xlane.xlu0 %1310
          %1312 = vadd.xlane.f32.xlu0 %v1285
          %v1313 = vpop.xlane.xlu0 %1312
          %1314 = vadd.xlane.f32.xlu0 %v1286
          %v1315 = vpop.xlane.xlu0 %1314
          %1316 = vadd.xlane.f32.xlu0 %v1287
          %v1317 = vpop.xlane.xlu0 %1316
          %1318 = vadd.xlane.f32.xlu0 %v1288
          %v1319 = vpop.xlane.xlu0 %1318
          %1320 = vadd.xlane.f32.xlu0 %v1289
          %v1321 = vpop.xlane.xlu0 %1320
          %v1322 = vmax.f32 %v1291, 1e-24
          %v1323 = vmax.f32 %v1293, 1e-24
          %v1324 = vmax.f32 %v1295, 1e-24
          %v1325 = vmax.f32 %v1297, 1e-24
          %v1326 = vmax.f32 %v1299, 1e-24
          %v1327 = vmax.f32 %v1301, 1e-24
          %v1328 = vmax.f32 %v1303, 1e-24
          %v1329 = vmax.f32 %v1305, 1e-24
          %v1330 = vmax.f32 %v1307, 1e-24
          %v1331 = vmax.f32 %v1309, 1e-24
          %v1332 = vmax.f32 %v1311, 1e-24
          %v1333 = vmax.f32 %v1313, 1e-24
          %v1334 = vmax.f32 %v1315, 1e-24
          %v1335 = vmax.f32 %v1317, 1e-24
          %v1336 = vmax.f32 %v1319, 1e-24
          %v1337 = vmax.f32 %v1321, 1e-24
          %v1338 = vrsqrt.pop %v1322
          %v1339 = vrsqrt.pop %v1323
          %v1340 = vrsqrt.pop %v1324
          %v1341 = vrsqrt.pop %v1325
          %v1342 = vrsqrt.pop %v1326
          %v1343 = vrsqrt.pop %v1327
          %v1344 = vrsqrt.pop %v1328
          %v1345 = vrsqrt.pop %v1329
          %v1346 = vrsqrt.pop %v1330
          %v1347 = vrsqrt.pop %v1331
          %v1348 = vrsqrt.pop %v1332
          %v1349 = vrsqrt.pop %v1333
          %v1350 = vrsqrt.pop %v1334
          %v1351 = vrsqrt.pop %v1335
          %v1352 = vrsqrt.pop %v1336
          %v1353 = vrsqrt.pop %v1337
          %v1354 = vmul.f32 %v1214, %v1338
          %v1355 = vmul.f32 %v1215, %v1339
          %v1356 = vmul.f32 %v1216, %v1340
          %v1357 = vmul.f32 %v1217, %v1341
          %v1358 = vmul.f32 %v1218, %v1342
          %v1359 = vmul.f32 %v1219, %v1343
          %v1360 = vmul.f32 %v1220, %v1344
          %v1361 = vmul.f32 %v1221, %v1345
          %v1362 = vmul.f32 %v1222, %v1346
          %v1363 = vmul.f32 %v1223, %v1347
          %v1364 = vmul.f32 %v1224, %v1348
          %v1365 = vmul.f32 %v1225, %v1349
          %v1366 = vmul.f32 %v1226, %v1350
          %v1367 = vmul.f32 %v1227, %v1351
          %v1368 = vmul.f32 %v1228, %v1352
          %v1369 = vmul.f32 %v1229, %v1353
          %1370 = vst [vmem:[%s293] sm:$0xff] %v1354
          %1371 = vst [vmem:[%s293 + $0x8] sm:$0xff] %v1355
          %1372 = vst [vmem:[%s293 + $0x10] sm:$0xff] %v1356
          %1373 = vst [vmem:[%s293 + $0x18] sm:$0xff] %v1357
          %1374 = vst [vmem:[%s293 + $0x20] sm:$0xff] %v1358
          %1375 = vst [vmem:[%s293 + $0x28] sm:$0xff] %v1359
          %1376 = vst [vmem:[%s293 + $0x30] sm:$0xff] %v1360
          %1377 = vst [vmem:[%s293 + $0x38] sm:$0xff] %v1361
          %1378 = vst [vmem:[%s293 + $0x40] sm:$0xff] %v1362
          %1379 = vst [vmem:[%s293 + $0x48] sm:$0xff] %v1363
          %1380 = vst [vmem:[%s293 + $0x50] sm:$0xff] %v1364
          %1381 = vst [vmem:[%s293 + $0x58] sm:$0xff] %v1365
          %1382 = vst [vmem:[%s293 + $0x60] sm:$0xff] %v1366
          %1383 = vst [vmem:[%s293 + $0x68] sm:$0xff] %v1367
          %1384 = vst [vmem:[%s293 + $0x70] sm:$0xff] %v1368
          %1385 = vst [vmem:[%s293 + $0x78] sm:$0xff] %v1369
        $region64: #{stru_gnn_forward.1} parent=55 // pred_fallthru
          _
      $region56: #{stru_gnn_forward.1} parent=35 // pred_fallthru
        _
      %s1386 = smul.u32 16, %s29
      %p1387 = scmp.lt.s32.totalorder %s27, 1
      %s1388 = scalar_select %p1387, %s27, 1
      %p1389 = scmp.lt.s32.totalorder %s1386, 15
      %s1390 = scalar_select %p1389, %s1386, 15
      %s1391 = smul.addr %s1388, 16
      %s1392 = sadd.s32 %s1390, %s1391
      %s1393 = smul.addr %s1392, 8
      %s1394 = scalar_lea.vmem %s5, %s1393
      // Predicated region
      $region65: #{stru_gnn_forward.1} parent=35 // pred_check
        %p1395 = pneg %p165
      $region66: #{stru_gnn_forward.1} parent=35 // pred_check_branch
        %1397 = sbr.rel (%p1395) target = $region68
      $region67: #{stru_gnn_forward.1} parent=35 // pred_region
        %s1398 = smul.u32 16, %s29
      $region68: #{stru_gnn_forward.1} parent=35 // pred_fallthru
        _
    $region36: #{stru_gnn_forward.1} parent=5 // pred_fallthru
      _
    %p1399 = scmp.le.s32.totalorder 2, %s17
    // Predicated region
    $region69: #{stru_gnn_forward.1} parent=5 // pred_check
      %p1400 = pneg %p1399
    $region70: #{stru_gnn_forward.1} parent=5 // pred_check_branch
      %1402 = sbr.rel (%p1400) target = $region72
    $region71: #{stru_gnn_forward.1} parent=5 // pred_region
      %s1403 = ssub.s32 %s17, 2
      // Predicated region
      $region73: #{stru_gnn_forward.1} parent=71 // pred_check
        %p1404 = pneg %p171
      $region74: #{stru_gnn_forward.1} parent=71 // pred_check_branch
        %1406 = sbr.rel (%p1404) target = $region76
      $region75: #{stru_gnn_forward.1} parent=71 // pred_region
        %s1407 = smul.u32 16, %s32
        %p1408 = scmp.lt.s32.totalorder %s30, 1
        %s1409 = scalar_select %p1408, %s30, 1
        %p1410 = scmp.lt.s32.totalorder %s1407, 15
        %s1411 = scalar_select %p1410, %s1407, 15
        %s1412 = smul.addr %s1409, 16
        %s1413 = sadd.s32 %s1411, %s1412
        %s1414 = smul.addr %s1413, 8
        %s1415 = scalar_lea.vmem %s5, %s1414
      $region76: #{stru_gnn_forward.1} parent=71 // pred_fallthru
        _
    $region72: #{stru_gnn_forward.1} parent=5 // pred_fallthru
      _
  $region6: #{stru_gnn_forward.1} parent=0 // loop_footer
    %s21 = sadd.s32 1, %s17
  $region7: #{stru_gnn_forward.1} parent=0 // loop_footer_branch
    %16 = sbr.rel target = $region3
  $region8: #{stru_gnn_forward.1} parent=0 // loop_exit
    _

</llo_original>
